<compile_context>
chip_gen: v7x
topology: tpu7x:2x2x1
jax: 0.10.0
libtpu: 0.0.40
codegen_flags: <defaults>
</compile_context>

<pallas_src>
import jax
import jax.numpy as jnp
from jax.experimental import pallas as pl
from jax.experimental.pallas import tpu as pltpu

DIM = 5
NUM_JOINTS = 17
VIN = NUM_JOINTS * 2          # 34 channels of the flattened (B, V*2, N) pose tensor

head_joint_idx       = [0, 1, 4, 7, 8, 11, 14, 9, 10]
hand_joint_left_idx  = [0, 1, 4, 7, 8, 11, 14, 12, 13]
hand_joint_right_idx = [0, 1, 4, 7, 8, 11, 14, 15, 16]
foot_joint_left_idx  = [0, 1, 4, 7, 8, 11, 14, 5, 6]
foot_joint_right_idx = [0, 1, 4, 7, 8, 11, 14, 2, 3]

# Order must match torch.cat((head, hand_left, hand_right, foot_left, foot_right), dim=1)
PART_IDX = [head_joint_idx, hand_joint_left_idx, hand_joint_right_idx,
            foot_joint_left_idx, foot_joint_right_idx]
NUM_PARTS = len(PART_IDX)
NUM_LAYERS = 2                     # PartFeatureModel.num_layers
CONVS_PER_PART = 2 * NUM_LAYERS    # conv_layers list length (4)


def _fold_bn(gamma, beta, mean, var, eps=1e-5):
    scale = gamma / jnp.sqrt(var + eps)
    shift = beta - mean * scale
    return scale, shift


# --------------------------------------------------------------------------
# Kernel: one (batch, frame-tile) block.  Channels on sublanes, frames on
# lanes.  Five part models run block-diagonally inside one set of matmuls.
# --------------------------------------------------------------------------
def multi_part_kernel(x_ref, we_ref, be_ref, wl_ref, bl_ref, ws_ref, bs_ref,
                      out_ref):
    # x block: (1, VIN, TILE_N) f32 -> (VIN, TILE_N); MXU operands in bf16.
    x_in = x_ref[0].astype(jnp.bfloat16)

    # expand_conv (gather + expand_bn scale folded into we) -> shift -> relu
    x = jnp.dot(we_ref[...], x_in, preferred_element_type=jnp.float32)
    x = jnp.maximum(x + be_ref[...], 0.0)                     # (C_pad, TILE_N) f32

    # two residual blocks, each two (conv -> bn -> relu); block-diag weights
    # keep every part independent exactly as in the reference.  Dropout = id.
    for i in range(NUM_LAYERS):
        res = x
        for j in range(2):
            k = 2 * i + j
            x = jnp.dot(wl_ref[k], x.astype(jnp.bfloat16),
                        preferred_element_type=jnp.float32)
            x = jnp.maximum(x + bl_ref[k], 0.0)
        x = res + x

    # shrink_conv (+ folded shrink_bn scale) -> shift -> relu.  Output block is
    # (O, TILE_N): lane dim = frames (dense), already in NCHW order.
    y = jnp.dot(ws_ref[...], x.astype(jnp.bfloat16),
                preferred_element_type=jnp.float32)
    out_ref[0] = jnp.maximum(y + bs_ref[...], 0.0)


# --------------------------------------------------------------------------
# Parameter packing: per-part params -> transposed, block-diagonal, BN-scale
# folded, gather folded, zero-padded to C_pad lanes, matmul weights in bf16.
# --------------------------------------------------------------------------
def pack_params(params):
    P, Cin, C = params["we"].shape
    O = params["ws"].shape[-1]
    Ctot = P * C
    C_pad = -(-Ctot // 128) * 128                              # 100 -> 128

    we_f = params["we"] * params["se"]                         # (P, Cin, C)
    wl_f = params["wl"] * params["sl"]                         # (P, 4, C, C)

    # expand conv, (out, in) orientation, joint gather folded into the columns:
    # row (p*C + cout), column (2*joint + coord).
    W_exp_T = jnp.zeros((C_pad, VIN), jnp.float32)
    for p, idx in enumerate(PART_IDX):
        cols = jnp.array([2 * j + c for j in idx for c in range(2)], jnp.int32)
        blk = jnp.zeros((C, VIN), jnp.float32).at[:, cols].set(we_f[p].T)
        W_exp_T = W_exp_T.at[p * C:(p + 1) * C, :].set(blk)
    b_exp = jnp.zeros((C_pad, 1), jnp.float32).at[:Ctot, 0].set(
        params["be"].reshape(Ctot))

    # residual-layer convs, transposed + block-diagonal: (4, C_pad, C_pad)
    W_lay_T = jnp.zeros((CONVS_PER_PART, C_pad, C_pad), jnp.float32)
    for p in range(P):
        W_lay_T = W_lay_T.at[:, p * C:(p + 1) * C, p * C:(p + 1) * C].set(
            jnp.swapaxes(wl_f[p], -1, -2))
    b_lay = jnp.zeros((CONVS_PER_PART, C_pad, 1), jnp.float32).at[:, :Ctot, 0].set(
        params["bl"].transpose(1, 0, 2, 3).reshape(CONVS_PER_PART, Ctot))

    # shrink conv, transposed dense (O, C_pad), shrink BN scale folded in.
    W_shr = params["ws"].reshape(Ctot, O) * params["ss"]        # (Ctot, O)
    W_shr_T = jnp.zeros((O, C_pad), jnp.float32).at[:, :Ctot].set(W_shr.T)
    b_shr = params["bs"].reshape(O, 1)

    return dict(W_exp=W_exp_T.astype(jnp.bfloat16), b_exp=b_exp,
                W_lay=W_lay_T.astype(jnp.bfloat16), b_lay=b_lay,
                W_shr=W_shr_T.astype(jnp.bfloat16), b_shr=b_shr)


# --------------------------------------------------------------------------
# Wrapper: no gather/transpose pre-pass — pos_2d is reshaped (view only) to
# (B, V*2, N) and tiled over (batch, frames).
# --------------------------------------------------------------------------
def multi_part_feature_forward(pos_2d, packed):
    """pos_2d: (B, V, 2, N) float32. Returns (B, O//DIM, DIM, 1, N) float32."""
    B, V, two, N = pos_2d.shape
    assert two == 2 and V == NUM_JOINTS
    C_pad = packed["W_exp"].shape[0]
    O = packed["W_shr"].shape[0]

    x = pos_2d.reshape(B, V * 2, N)                             # pure view, stays f32

    # Frame tiling: lane axis = frames.  Keep tiles big (amortize per-step
    # overhead), but make sure a 2-TC chip (v7x) gets >= 2 parallel grid steps.
    MAX_TILE_N = 2048
    if B >= 2 or N <= 256:
        TILE_N = min(N, MAX_TILE_N)
    else:  # B == 1 and N large: split frames in (at least) two 128-aligned tiles
        half = (N + 1) // 2
        TILE_N = min(MAX_TILE_N, ((half + 127) // 128) * 128)
    grid = (B, pl.cdiv(N, TILE_N))
    # TODO(synk): partial last frame-tile relies on per-lane independence
    # (garbage lanes are masked at writeback); pad N if cross-frame ops appear.

    out = pl.pallas_call(
        multi_part_kernel,
        out_shape=jax.ShapeDtypeStruct((B, O, N), jnp.float32),
        grid_spec=pltpu.PrefetchScalarGridSpec(
            num_scalar_prefetch=0,
            grid=grid,
            in_specs=[
                pl.BlockSpec((1, VIN, TILE_N), lambda b, n: (b, 0, n)),      # pose rows
                pl.BlockSpec((C_pad, VIN), lambda b, n: (0, 0)),             # expand W^T
                pl.BlockSpec((C_pad, 1), lambda b, n: (0, 0)),               # expand shift
                pl.BlockSpec((CONVS_PER_PART, C_pad, C_pad),
                             lambda b, n: (0, 0, 0)),                        # layer W^T
                pl.BlockSpec((CONVS_PER_PART, C_pad, 1),
                             lambda b, n: (0, 0, 0)),                        # layer shifts
                pl.BlockSpec((O, C_pad), lambda b, n: (0, 0)),               # shrink W^T
                pl.BlockSpec((O, 1), lambda b, n: (0, 0)),                   # shrink shift
            ],
            out_specs=pl.BlockSpec((1, O, TILE_N), lambda b, n: (b, 0, n)),
        ),
        compiler_params=pltpu.CompilerParams(
            dimension_semantics=("parallel", "parallel")),
    )(x, packed["W_exp"], packed["b_exp"], packed["W_lay"], packed["b_lay"],
      packed["W_shr"], packed["b_shr"])

    # out is already NCHW (B, O, N) == (B, O, 1, N); final 5-D view only.
    return out.reshape(B, O // DIM, DIM, 1, N)


# --------------------------------------------------------------------------
# Pure-JAX reference of the same inference-mode math, per-part / unfolded
# parameters, with the SAME bf16 operand rounding as the kernel (so the only
# remaining difference is f32 accumulation order).  Validates the gather fold,
# block-diag packing, zero padding and BN-scale folding.
# --------------------------------------------------------------------------
def reference_forward(pos_2d, params):
    B, V, _, N = pos_2d.shape
    P = NUM_PARTS
    Cin = len(PART_IDX[0]) * 2
    C = params["we"].shape[-1]
    O = params["ws"].shape[-1]
    M = B * N

    x_bf = pos_2d.astype(jnp.bfloat16)
    we_b = (params["we"] * params["se"]).astype(jnp.bfloat16)              # (P,Cin,C)
    wl_b = (params["wl"] * params["sl"]).astype(jnp.bfloat16)              # (P,4,C,C)
    ws_b = (params["ws"].reshape(P * C, O) * params["ss"]).astype(
        jnp.bfloat16).reshape(P, C, O)

    acc = jnp.zeros((M, O), jnp.float32)
    for p, idx in enumerate(PART_IDX):
        xp = x_bf[:, jnp.array(idx), :, :].reshape(B, Cin, N)
        xr = xp.transpose(0, 2, 1).reshape(M, Cin)
        h = jnp.maximum(
            jnp.dot(xr, we_b[p], preferred_element_type=jnp.float32)
            + params["be"][p], 0.0)
        for i in range(NUM_LAYERS):
            res = h
            for j in range(2):
                k = 2 * i + j
                h = jnp.maximum(
                    jnp.dot(h.astype(jnp.bfloat16), wl_b[p, k],
                            preferred_element_type=jnp.float32)
                    + params["bl"][p, k], 0.0)
            h = res + h
        acc = acc + jnp.dot(h.astype(jnp.bfloat16), ws_b[p],
                            preferred_element_type=jnp.float32)
    out = jnp.maximum(acc + params["bs"], 0.0)
    out = out.reshape(B, N, O).transpose(0, 2, 1).reshape(B, O, 1, N)
    return out.reshape(B, O // DIM, DIM, 1, N)


def init_params(key, Cin, C, O):
    """Deterministic synthetic parameters; BN folded to per-channel scale/shift."""
    P = NUM_PARTS
    keys = jax.random.split(key, 6)

    we = jax.random.normal(keys[0], (P, Cin, C), jnp.float32) * 0.1
    wl = jax.random.normal(keys[1], (P, CONVS_PER_PART, C, C), jnp.float32) * 0.1
    ws = (jax.random.normal(keys[2], (P * C, O), jnp.float32) * 0.1).reshape(P, C, O)

    def bn(kg, kb, km, kv, shape):
        gamma = 0.5 + jax.random.uniform(kg, shape, jnp.float32)
        beta = jax.random.normal(kb, shape, jnp.float32) * 0.1
        mean = jax.random.normal(km, shape, jnp.float32) * 0.1
        var = 0.5 + jax.random.uniform(kv, shape, jnp.float32)
        return _fold_bn(gamma, beta, mean, var)

    se, be = bn(*jax.random.split(keys[3], 4), (P, 1, C))
    sl, bl = bn(*jax.random.split(keys[4], 4), (P, CONVS_PER_PART, 1, C))
    ss, bs = bn(*jax.random.split(keys[5], 4), (1, O))

    return dict(we=we, se=se, be=be, wl=wl, sl=sl, bl=bl, ws=ws, ss=ss, bs=bs)


if __name__ == "__main__":
    # Small shapes: B=2 batches, V=17 joints, 2-D coords, N=8 frames,
    # channels=20 (divisible by DIM=5), oup_channels=10.
    B, V, N = 2, 17, 8
    CIN = len(head_joint_idx) * 2      # 18
    CHANNELS = 20
    OUP_CHANNELS = 10

    key = jax.random.PRNGKey(0)
    k_in, k_par = jax.random.split(key)
    pos_2d = jax.random.normal(k_in, (B, V, 2, N), jnp.float32)
    params = init_params(k_par, CIN, CHANNELS, OUP_CHANNELS)
    packed = pack_params(params)

    out = multi_part_feature_forward(pos_2d, packed)
    out = jax.block_until_ready(out)

    ref = reference_forward(pos_2d, params)
    assert out.shape == (B, OUP_CHANNELS // DIM, DIM, 1, N), out.shape
    assert jnp.allclose(out, ref, atol=5e-3, rtol=5e-3), "mismatch vs reference"

    print("KERNEL_OK")
</pallas_src>

<mosaic_0001>
module attributes {stable_mosaic.version = 11 : i64} {
  func.func @multi_part_kernel(%arg0: i32, %arg1: i32, %arg2: memref<1x34x8xf32, #tpu.memory_space<vmem>>, %arg3: memref<128x34xbf16, #tpu.memory_space<vmem>>, %arg4: memref<128x1xf32, #tpu.memory_space<vmem>>, %arg5: memref<4x128x128xbf16, #tpu.memory_space<vmem>>, %arg6: memref<4x128x1xf32, #tpu.memory_space<vmem>>, %arg7: memref<10x128xbf16, #tpu.memory_space<vmem>>, %arg8: memref<10x1xf32, #tpu.memory_space<vmem>>, %arg9: memref<1x10x8xf32, #tpu.memory_space<vmem>>) attributes {dimension_semantics = [#tpu.dimension_semantics<parallel>, #tpu.dimension_semantics<parallel>], iteration_bounds = array<i64: 2, 1>, scalar_prefetch = 0 : i64, scratch_operands = 0 : i64, tpu.core_type = #tpu.core_type<tc>, window_params = [{transform_indices = @transform_0, window_bounds = array<i64: 1, 34, 8>}, {pipeline_mode = #tpu.pipeline_mode<synchronous>, transform_indices = @transform_1, window_bounds = array<i64: 128, 34>}, {pipeline_mode = #tpu.pipeline_mode<synchronous>, transform_indices = @transform_2, window_bounds = array<i64: 128, 1>}, {pipeline_mode = #tpu.pipeline_mode<synchronous>, transform_indices = @transform_3, window_bounds = array<i64: 4, 128, 128>}, {pipeline_mode = #tpu.pipeline_mode<synchronous>, transform_indices = @transform_4, window_bounds = array<i64: 4, 128, 1>}, {pipeline_mode = #tpu.pipeline_mode<synchronous>, transform_indices = @transform_5, window_bounds = array<i64: 10, 128>}, {pipeline_mode = #tpu.pipeline_mode<synchronous>, transform_indices = @transform_6, window_bounds = array<i64: 10, 1>}, {transform_indices = @transform_7, window_bounds = array<i64: 1, 10, 8>}]} {
    %c0 = arith.constant 0 : index
    %c0_0 = arith.constant 0 : index
    %c0_1 = arith.constant 0 : index
    %0 = vector.load %arg2[%c0, %c0_0, %c0_1] : memref<1x34x8xf32, #tpu.memory_space<vmem>>, vector<1x34x8xf32>
    %1 = vector.shape_cast %0 : vector<1x34x8xf32> to vector<34x8xf32>
    %2 = arith.truncf %1 : vector<34x8xf32> to vector<34x8xbf16>
    %c0_2 = arith.constant 0 : index
    %c0_3 = arith.constant 0 : index
    %3 = vector.load %arg3[%c0_2, %c0_3] : memref<128x34xbf16, #tpu.memory_space<vmem>>, vector<128x34xbf16>
    %cst = arith.constant dense<0.000000e+00> : vector<128x8xf32>
    %4 = tpu.matmul %3, %2, %cst {dimension_numbers = #tpu.dot_dimension_numbers<[1], [0], [0], [1], [0, 0, 1, 1], [], []>} : vector<128x34xbf16>, vector<34x8xbf16>, vector<128x8xf32> -> vector<128x8xf32>
    %c0_4 = arith.constant 0 : index
    %c0_5 = arith.constant 0 : index
    %5 = vector.load %arg4[%c0_4, %c0_5] : memref<128x1xf32, #tpu.memory_space<vmem>>, vector<128x1xf32>
    %6 = vector.broadcast %5 : vector<128x1xf32> to vector<128x8xf32>
    %7 = arith.addf %4, %6 : vector<128x8xf32>
    %cst_6 = arith.constant 0.000000e+00 : f32
    %8 = vector.broadcast %cst_6 : f32 to vector<128x8xf32>
    %9 = arith.maximumf %7, %8 : vector<128x8xf32>
    %c0_7 = arith.constant 0 : index
    %c0_8 = arith.constant 0 : index
    %c0_9 = arith.constant 0 : index
    %10 = vector.load %arg5[%c0_7, %c0_8, %c0_9] : memref<4x128x128xbf16, #tpu.memory_space<vmem>>, vector<1x128x128xbf16>
    %11 = vector.shape_cast %10 : vector<1x128x128xbf16> to vector<128x128xbf16>
    %12 = arith.truncf %9 : vector<128x8xf32> to vector<128x8xbf16>
    %cst_10 = arith.constant dense<0.000000e+00> : vector<128x8xf32>
    %13 = tpu.matmul %11, %12, %cst_10 {dimension_numbers = #tpu.dot_dimension_numbers<[1], [0], [0], [1], [0, 0, 1, 1], [], []>} : vector<128x128xbf16>, vector<128x8xbf16>, vector<128x8xf32> -> vector<128x8xf32>
    %c0_11 = arith.constant 0 : index
    %c0_12 = arith.constant 0 : index
    %c0_13 = arith.constant 0 : index
    %14 = vector.load %arg6[%c0_11, %c0_12, %c0_13] : memref<4x128x1xf32, #tpu.memory_space<vmem>>, vector<1x128x1xf32>
    %15 = vector.shape_cast %14 : vector<1x128x1xf32> to vector<128x1xf32>
    %16 = vector.broadcast %15 : vector<128x1xf32> to vector<128x8xf32>
    %17 = arith.addf %13, %16 : vector<128x8xf32>
    %cst_14 = arith.constant 0.000000e+00 : f32
    %18 = vector.broadcast %cst_14 : f32 to vector<128x8xf32>
    %19 = arith.maximumf %17, %18 : vector<128x8xf32>
    %c1 = arith.constant 1 : index
    %c0_15 = arith.constant 0 : index
    %c0_16 = arith.constant 0 : index
    %20 = vector.load %arg5[%c1, %c0_15, %c0_16] : memref<4x128x128xbf16, #tpu.memory_space<vmem>>, vector<1x128x128xbf16>
    %21 = vector.shape_cast %20 : vector<1x128x128xbf16> to vector<128x128xbf16>
    %22 = arith.truncf %19 : vector<128x8xf32> to vector<128x8xbf16>
    %cst_17 = arith.constant dense<0.000000e+00> : vector<128x8xf32>
    %23 = tpu.matmul %21, %22, %cst_17 {dimension_numbers = #tpu.dot_dimension_numbers<[1], [0], [0], [1], [0, 0, 1, 1], [], []>} : vector<128x128xbf16>, vector<128x8xbf16>, vector<128x8xf32> -> vector<128x8xf32>
    %c1_18 = arith.constant 1 : index
    %c0_19 = arith.constant 0 : index
    %c0_20 = arith.constant 0 : index
    %24 = vector.load %arg6[%c1_18, %c0_19, %c0_20] : memref<4x128x1xf32, #tpu.memory_space<vmem>>, vector<1x128x1xf32>
    %25 = vector.shape_cast %24 : vector<1x128x1xf32> to vector<128x1xf32>
    %26 = vector.broadcast %25 : vector<128x1xf32> to vector<128x8xf32>
    %27 = arith.addf %23, %26 : vector<128x8xf32>
    %cst_21 = arith.constant 0.000000e+00 : f32
    %28 = vector.broadcast %cst_21 : f32 to vector<128x8xf32>
    %29 = arith.maximumf %27, %28 : vector<128x8xf32>
    %30 = arith.addf %9, %29 : vector<128x8xf32>
    %c2 = arith.constant 2 : index
    %c0_22 = arith.constant 0 : index
    %c0_23 = arith.constant 0 : index
    %31 = vector.load %arg5[%c2, %c0_22, %c0_23] : memref<4x128x128xbf16, #tpu.memory_space<vmem>>, vector<1x128x128xbf16>
    %32 = vector.shape_cast %31 : vector<1x128x128xbf16> to vector<128x128xbf16>
    %33 = arith.truncf %30 : vector<128x8xf32> to vector<128x8xbf16>
    %cst_24 = arith.constant dense<0.000000e+00> : vector<128x8xf32>
    %34 = tpu.matmul %32, %33, %cst_24 {dimension_numbers = #tpu.dot_dimension_numbers<[1], [0], [0], [1], [0, 0, 1, 1], [], []>} : vector<128x128xbf16>, vector<128x8xbf16>, vector<128x8xf32> -> vector<128x8xf32>
    %c2_25 = arith.constant 2 : index
    %c0_26 = arith.constant 0 : index
    %c0_27 = arith.constant 0 : index
    %35 = vector.load %arg6[%c2_25, %c0_26, %c0_27] : memref<4x128x1xf32, #tpu.memory_space<vmem>>, vector<1x128x1xf32>
    %36 = vector.shape_cast %35 : vector<1x128x1xf32> to vector<128x1xf32>
    %37 = vector.broadcast %36 : vector<128x1xf32> to vector<128x8xf32>
    %38 = arith.addf %34, %37 : vector<128x8xf32>
    %cst_28 = arith.constant 0.000000e+00 : f32
    %39 = vector.broadcast %cst_28 : f32 to vector<128x8xf32>
    %40 = arith.maximumf %38, %39 : vector<128x8xf32>
    %c3 = arith.constant 3 : index
    %c0_29 = arith.constant 0 : index
    %c0_30 = arith.constant 0 : index
    %41 = vector.load %arg5[%c3, %c0_29, %c0_30] : memref<4x128x128xbf16, #tpu.memory_space<vmem>>, vector<1x128x128xbf16>
    %42 = vector.shape_cast %41 : vector<1x128x128xbf16> to vector<128x128xbf16>
    %43 = arith.truncf %40 : vector<128x8xf32> to vector<128x8xbf16>
    %cst_31 = arith.constant dense<0.000000e+00> : vector<128x8xf32>
    %44 = tpu.matmul %42, %43, %cst_31 {dimension_numbers = #tpu.dot_dimension_numbers<[1], [0], [0], [1], [0, 0, 1, 1], [], []>} : vector<128x128xbf16>, vector<128x8xbf16>, vector<128x8xf32> -> vector<128x8xf32>
    %c3_32 = arith.constant 3 : index
    %c0_33 = arith.constant 0 : index
    %c0_34 = arith.constant 0 : index
    %45 = vector.load %arg6[%c3_32, %c0_33, %c0_34] : memref<4x128x1xf32, #tpu.memory_space<vmem>>, vector<1x128x1xf32>
    %46 = vector.shape_cast %45 : vector<1x128x1xf32> to vector<128x1xf32>
    %47 = vector.broadcast %46 : vector<128x1xf32> to vector<128x8xf32>
    %48 = arith.addf %44, %47 : vector<128x8xf32>
    %cst_35 = arith.constant 0.000000e+00 : f32
    %49 = vector.broadcast %cst_35 : f32 to vector<128x8xf32>
    %50 = arith.maximumf %48, %49 : vector<128x8xf32>
    %51 = arith.addf %30, %50 : vector<128x8xf32>
    %c0_36 = arith.constant 0 : index
    %c0_37 = arith.constant 0 : index
    %52 = vector.load %arg7[%c0_36, %c0_37] : memref<10x128xbf16, #tpu.memory_space<vmem>>, vector<10x128xbf16>
    %53 = arith.truncf %51 : vector<128x8xf32> to vector<128x8xbf16>
    %cst_38 = arith.constant dense<0.000000e+00> : vector<10x8xf32>
    %54 = tpu.matmul %52, %53, %cst_38 {dimension_numbers = #tpu.dot_dimension_numbers<[1], [0], [0], [1], [0, 0, 1, 1], [], []>} : vector<10x128xbf16>, vector<128x8xbf16>, vector<10x8xf32> -> vector<10x8xf32>
    %c0_39 = arith.constant 0 : index
    %c0_40 = arith.constant 0 : index
    %55 = vector.load %arg8[%c0_39, %c0_40] : memref<10x1xf32, #tpu.memory_space<vmem>>, vector<10x1xf32>
    %56 = vector.broadcast %55 : vector<10x1xf32> to vector<10x8xf32>
    %57 = arith.addf %54, %56 : vector<10x8xf32>
    %cst_41 = arith.constant 0.000000e+00 : f32
    %58 = vector.broadcast %cst_41 : f32 to vector<10x8xf32>
    %59 = arith.maximumf %57, %58 : vector<10x8xf32>
    %c0_42 = arith.constant 0 : index
    %c0_43 = arith.constant 0 : index
    %c0_44 = arith.constant 0 : index
    %60 = vector.load %arg9[%c0_42, %c0_43, %c0_44] : memref<1x10x8xf32, #tpu.memory_space<vmem>>, vector<1x10x8xf32>
    %61 = vector.shape_cast %60 : vector<1x10x8xf32> to vector<10x8xf32>
    %62 = vector.shape_cast %59 : vector<10x8xf32> to vector<1x10x8xf32>
    tpu.vector_store %arg9[%c0_42, %c0_43, %c0_44], %62 {strides = array<i32>} : memref<1x10x8xf32, #tpu.memory_space<vmem>>, vector<1x10x8xf32>,
    return
  }
  func.func @transform_0(%arg0: i32, %arg1: i32) -> (i32, i32, i32) {
    %c0_i32 = arith.constant 0 : i32
    %c0_i32_0 = arith.constant 0 : i32
    return %arg0, %c0_i32, %arg1 : i32, i32, i32
  }
  func.func @transform_1(%arg0: i32, %arg1: i32) -> (i32, i32) {
    %c0_i32 = arith.constant 0 : i32
    %c0_i32_0 = arith.constant 0 : i32
    %c0_i32_1 = arith.constant 0 : i32
    return %c0_i32, %c0_i32_0 : i32, i32
  }
  func.func @transform_2(%arg0: i32, %arg1: i32) -> (i32, i32) {
    %c0_i32 = arith.constant 0 : i32
    %c0_i32_0 = arith.constant 0 : i32
    %c0_i32_1 = arith.constant 0 : i32
    return %c0_i32, %c0_i32_0 : i32, i32
  }
  func.func @transform_3(%arg0: i32, %arg1: i32) -> (i32, i32, i32) {
    %c0_i32 = arith.constant 0 : i32
    %c0_i32_0 = arith.constant 0 : i32
    %c0_i32_1 = arith.constant 0 : i32
    %c0_i32_2 = arith.constant 0 : i32
    return %c0_i32, %c0_i32_0, %c0_i32_1 : i32, i32, i32
  }
  func.func @transform_4(%arg0: i32, %arg1: i32) -> (i32, i32, i32) {
    %c0_i32 = arith.constant 0 : i32
    %c0_i32_0 = arith.constant 0 : i32
    %c0_i32_1 = arith.constant 0 : i32
    %c0_i32_2 = arith.constant 0 : i32
    return %c0_i32, %c0_i32_0, %c0_i32_1 : i32, i32, i32
  }
  func.func @transform_5(%arg0: i32, %arg1: i32) -> (i32, i32) {
    %c0_i32 = arith.constant 0 : i32
    %c0_i32_0 = arith.constant 0 : i32
    %c0_i32_1 = arith.constant 0 : i32
    return %c0_i32, %c0_i32_0 : i32, i32
  }
  func.func @transform_6(%arg0: i32, %arg1: i32) -> (i32, i32) {
    %c0_i32 = arith.constant 0 : i32
    %c0_i32_0 = arith.constant 0 : i32
    %c0_i32_1 = arith.constant 0 : i32
    return %c0_i32, %c0_i32_0 : i32, i32
  }
  func.func @transform_7(%arg0: i32, %arg1: i32) -> (i32, i32, i32) {
    %c0_i32 = arith.constant 0 : i32
    %c0_i32_0 = arith.constant 0 : i32
    return %arg0, %c0_i32, %arg1 : i32, i32, i32
  }
}

</mosaic_0001>

<llo_original>
// kernel: tpu_custom_call.1
$region0: #{tpu_custom_call.1}
  #allocation0 [shape = 'u32[]', space=smem, size = 0x4, offset = 0x4, fixed_abs, tag = 'smem constant byte address 0x4 - core index']
  #allocation1 [shape = 'u32[144,128]{1,0:T(1,128)}', space=vmem, size = 0x12000, scoped, tag = 'internal scratch']
  %s0 = inlined_call_operand.vmem [shape: f32[2,34,8], index: 0, kind: input, shape index: {}]
  %s1 = inlined_call_operand.vmem [shape: bf16[128,34], index: 1, kind: input, shape index: {}]
  %s2 = inlined_call_operand.vmem [shape: f32[128,1], index: 2, kind: input, shape index: {}]
  %s3 = inlined_call_operand.vmem [shape: bf16[4,128,128], index: 3, kind: input, shape index: {}]
  %s4 = inlined_call_operand.vmem [shape: f32[4,128,1], index: 4, kind: input, shape index: {}]
  %s5 = inlined_call_operand.vmem [shape: bf16[10,128], index: 5, kind: input, shape index: {}]
  %s6 = inlined_call_operand.vmem [shape: f32[10,1], index: 6, kind: input, shape index: {}]
  %s7 = inlined_call_operand.vmem [shape: f32[2,10,8], index: 7, kind: output, shape index: {}]
  %s8 = sld [smem:[#allocation0]]
  $region61: #{tpu_custom_call.1} parent=0
    _
  %s10 = ssub.s32 1, %s8
  %s11 = scalar_select 0, %s10, %s8
  loop: start=0, step=1, limit=4
  $region2: #{tpu_custom_call.1} parent=0 // loop_pre_header
    _
  $region3: #{tpu_custom_call.1} parent=0 // loop_header
    %s13 = sphi 0, %s17
    %p14 = scmp.ge.s32.totalorder %s13, 4
    %s20 = sphi 0, %s32
    %s21 = sphi 0, %s28
    %s22 = sphi 0, %s20
    %s23 = sphi 0, %s21
    %s24 = sphi 0, %s22
    %s25 = sphi 0, %s23
    %s37 = sphi 0, %s39
    %s40 = sphi 0, %s37
    %s41 = sphi 0, %s40
    %s57 = sphi 0, %s41
    %s61 = sphi 0, %s61
    %s63 = sphi 0, %s61
    %s64 = sphi 0, %s63
    %s78 = sphi 0, %s64
    %s82 = sphi 0, %s82
    %s84 = sphi 0, %s82
    %s85 = sphi 0, %s84
    %s99 = sphi 0, %s85
    %s103 = sphi 0, %s103
    %s105 = sphi 0, %s103
    %s106 = sphi 0, %s105
    %s120 = sphi 0, %s106
    %s124 = sphi 0, %s124
    %s126 = sphi 0, %s124
    %s127 = sphi 0, %s126
    %s141 = sphi 0, %s127
    %s145 = sphi 0, %s145
    %s147 = sphi 0, %s145
    %s148 = sphi 0, %s147
    %s162 = sphi 0, %s148
    %s166 = sphi 0, %s166
    %s168 = sphi 0, %s166
    %s169 = sphi 0, %s168
    %s183 = sphi 0, %s169
    %s191 = sphi 0, %s193
    %s194 = sphi 0, %s191
    %s195 = sphi 0, %s194
    %s211 = sphi 0, %s195
  $region4: #{tpu_custom_call.1} parent=0 // loop_header_branch
    %16 = sbr.rel (%p14) target = $region8
  $region5: #{tpu_custom_call.1} parent=0 // loop_body
    %s18 = ssub.s32 %s13, 1
    %s19 = ssub.s32 %s13, 2
    %s26 = sadd.s32 1, %s21
    %p27 = scmp.ge.s32.totalorder %s26, 1
    %s28 = scalar_select %p27, 0, %s26
    %s29 = sadd.s32 1, %s20
    %s30 = scalar_select %p27, %s29, %s20
    %p31 = scmp.ge.s32.totalorder %s30, 2
    %s32 = scalar_select %p31, 0, %s30
    %s33 = ssub.s32 %s20, %s32
    %s34 = ssub.s32 %s21, %s28
    %s35 = sor.u32 %s33, %s34
    %p36 = scmp.eq.s32.totalorder %s35, 0
    %s38 = sadd.s32 %s37, 1
    %s39 = scalar_select %p36, %s37, %s38
    %p42 = pneg %p36
    %p43 = scmp.eq.s32.totalorder %s13, 1
    %p44 = por %p42, %p43
    %p45 = scmp.ne.s32.totalorder %s37, %s40
    %p46 = scmp.eq.s32.totalorder %s13, 0
    %p47 = por %p45, %p46
    %p48 = scmp.ne.s32.totalorder %s37, %s40
    %p49 = scmp.eq.s32.totalorder %s18, 1
    %p50 = por %p48, %p49
    %p51 = scmp.ne.s32.totalorder %s40, %s41
    %p52 = scmp.eq.s32.totalorder %s18, 0
    %p53 = por %p51, %p52
    %p54 = scmp.ne.s32.totalorder %s40, %s41
    %p55 = scmp.eq.s32.totalorder %s19, 1
    %p56 = por %p54, %p55
    %p58 = scmp.ne.s32.totalorder %s41, %s57
    %p59 = scmp.eq.s32.totalorder %s19, 0
    %p60 = por %p58, %p59
    %s62 = sadd.s32 %s61, 1
    %p65 = scmp.eq.s32.totalorder %s13, 1
    %p66 = scmp.ne.s32.totalorder %s61, %s63
    %p67 = scmp.eq.s32.totalorder %s13, 0
    %p68 = por %p66, %p67
    %p69 = scmp.ne.s32.totalorder %s61, %s63
    %p70 = scmp.eq.s32.totalorder %s18, 1
    %p71 = por %p69, %p70
    %p72 = scmp.ne.s32.totalorder %s63, %s64
    %p73 = scmp.eq.s32.totalorder %s18, 0
    %p74 = por %p72, %p73
    %p75 = scmp.ne.s32.totalorder %s63, %s64
    %p76 = scmp.eq.s32.totalorder %s19, 1
    %p77 = por %p75, %p76
    %p79 = scmp.ne.s32.totalorder %s64, %s78
    %p80 = scmp.eq.s32.totalorder %s19, 0
    %p81 = por %p79, %p80
    %s83 = sadd.s32 %s82, 1
    %p86 = scmp.eq.s32.totalorder %s13, 1
    %p87 = scmp.ne.s32.totalorder %s82, %s84
    %p88 = scmp.eq.s32.totalorder %s13, 0
    %p89 = por %p87, %p88
    %p90 = scmp.ne.s32.totalorder %s82, %s84
    %p91 = scmp.eq.s32.totalorder %s18, 1
    %p92 = por %p90, %p91
    %p93 = scmp.ne.s32.totalorder %s84, %s85
    %p94 = scmp.eq.s32.totalorder %s18, 0
    %p95 = por %p93, %p94
    %p96 = scmp.ne.s32.totalorder %s84, %s85
    %p97 = scmp.eq.s32.totalorder %s19, 1
    %p98 = por %p96, %p97
    %p100 = scmp.ne.s32.totalorder %s85, %s99
    %p101 = scmp.eq.s32.totalorder %s19, 0
    %p102 = por %p100, %p101
    %s104 = sadd.s32 %s103, 1
    %p107 = scmp.eq.s32.totalorder %s13, 1
    %p108 = scmp.ne.s32.totalorder %s103, %s105
    %p109 = scmp.eq.s32.totalorder %s13, 0
    %p110 = por %p108, %p109
    %p111 = scmp.ne.s32.totalorder %s103, %s105
    %p112 = scmp.eq.s32.totalorder %s18, 1
    %p113 = por %p111, %p112
    %p114 = scmp.ne.s32.totalorder %s105, %s106
    %p115 = scmp.eq.s32.totalorder %s18, 0
    %p116 = por %p114, %p115
    %p117 = scmp.ne.s32.totalorder %s105, %s106
    %p118 = scmp.eq.s32.totalorder %s19, 1
    %p119 = por %p117, %p118
    %p121 = scmp.ne.s32.totalorder %s106, %s120
    %p122 = scmp.eq.s32.totalorder %s19, 0
    %p123 = por %p121, %p122
    %s125 = sadd.s32 %s124, 1
    %p128 = scmp.eq.s32.totalorder %s13, 1
    %p129 = scmp.ne.s32.totalorder %s124, %s126
    %p130 = scmp.eq.s32.totalorder %s13, 0
    %p131 = por %p129, %p130
    %p132 = scmp.ne.s32.totalorder %s124, %s126
    %p133 = scmp.eq.s32.totalorder %s18, 1
    %p134 = por %p132, %p133
    %p135 = scmp.ne.s32.totalorder %s126, %s127
    %p136 = scmp.eq.s32.totalorder %s18, 0
    %p137 = por %p135, %p136
    %p138 = scmp.ne.s32.totalorder %s126, %s127
    %p139 = scmp.eq.s32.totalorder %s19, 1
    %p140 = por %p138, %p139
    %p142 = scmp.ne.s32.totalorder %s127, %s141
    %p143 = scmp.eq.s32.totalorder %s19, 0
    %p144 = por %p142, %p143
    %s146 = sadd.s32 %s145, 1
    %p149 = scmp.eq.s32.totalorder %s13, 1
    %p150 = scmp.ne.s32.totalorder %s145, %s147
    %p151 = scmp.eq.s32.totalorder %s13, 0
    %p152 = por %p150, %p151
    %p153 = scmp.ne.s32.totalorder %s145, %s147
    %p154 = scmp.eq.s32.totalorder %s18, 1
    %p155 = por %p153, %p154
    %p156 = scmp.ne.s32.totalorder %s147, %s148
    %p157 = scmp.eq.s32.totalorder %s18, 0
    %p158 = por %p156, %p157
    %p159 = scmp.ne.s32.totalorder %s147, %s148
    %p160 = scmp.eq.s32.totalorder %s19, 1
    %p161 = por %p159, %p160
    %p163 = scmp.ne.s32.totalorder %s148, %s162
    %p164 = scmp.eq.s32.totalorder %s19, 0
    %p165 = por %p163, %p164
    %s167 = sadd.s32 %s166, 1
    %p170 = scmp.eq.s32.totalorder %s13, 1
    %p171 = scmp.ne.s32.totalorder %s166, %s168
    %p172 = scmp.eq.s32.totalorder %s13, 0
    %p173 = por %p171, %p172
    %p174 = scmp.ne.s32.totalorder %s166, %s168
    %p175 = scmp.eq.s32.totalorder %s18, 1
    %p176 = por %p174, %p175
    %p177 = scmp.ne.s32.totalorder %s168, %s169
    %p178 = scmp.eq.s32.totalorder %s18, 0
    %p179 = por %p177, %p178
    %p180 = scmp.ne.s32.totalorder %s168, %s169
    %p181 = scmp.eq.s32.totalorder %s19, 1
    %p182 = por %p180, %p181
    %p184 = scmp.ne.s32.totalorder %s169, %s183
    %p185 = scmp.eq.s32.totalorder %s19, 0
    %p186 = por %p184, %p185
    %s187 = ssub.s32 %s20, %s32
    %s188 = ssub.s32 %s21, %s28
    %s189 = sor.u32 %s187, %s188
    %p190 = scmp.eq.s32.totalorder %s189, 0
    %s192 = sadd.s32 %s191, 1
    %s193 = scalar_select %p190, %s191, %s192
    %p196 = pneg %p190
    %p197 = scmp.eq.s32.totalorder %s13, 1
    %p198 = por %p196, %p197
    %p199 = scmp.ne.s32.totalorder %s191, %s194
    %p200 = scmp.eq.s32.totalorder %s13, 0
    %p201 = por %p199, %p200
    %p202 = scmp.ne.s32.totalorder %s191, %s194
    %p203 = scmp.eq.s32.totalorder %s18, 1
    %p204 = por %p202, %p203
    %p205 = scmp.ne.s32.totalorder %s194, %s195
    %p206 = scmp.eq.s32.totalorder %s18, 0
    %p207 = por %p205, %p206
    %p208 = scmp.ne.s32.totalorder %s194, %s195
    %p209 = scmp.eq.s32.totalorder %s19, 1
    %p210 = por %p208, %p209
    %p212 = scmp.ne.s32.totalorder %s195, %s211
    %p213 = scmp.eq.s32.totalorder %s19, 0
    %p214 = por %p212, %p213
    %p215 = scmp.le.s32.totalorder 1, %s13
    %p216 = scmp.lt.s32.totalorder %s13, 3
    %p217 = pnand %p215, %p216
    %p218 = pneg %p217
    // Predicated region
    $region9: #{tpu_custom_call.1} parent=5 // pred_check
      _
    $region10: #{tpu_custom_call.1} parent=5 // pred_check_branch
      %220 = sbr.rel (%p217) target = $region12
    $region11: #{tpu_custom_call.1} parent=5 // pred_region
      %s221 = ssub.s32 %s13, 1
      // Predicated region
      $region13: #{tpu_custom_call.1} parent=11 // pred_check
        %p222 = pneg %p74
      $region14: #{tpu_custom_call.1} parent=11 // pred_check_branch
        %224 = sbr.rel (%p222) target = $region16
      $region15: #{tpu_custom_call.1} parent=11 // pred_region
        _
      $region16: #{tpu_custom_call.1} parent=11 // pred_fallthru
        _
      // Predicated region
      $region17: #{tpu_custom_call.1} parent=11 // pred_check
        %p225 = pneg %p95
      $region18: #{tpu_custom_call.1} parent=11 // pred_check_branch
        %227 = sbr.rel (%p225) target = $region20
      $region19: #{tpu_custom_call.1} parent=11 // pred_region
        _
      $region20: #{tpu_custom_call.1} parent=11 // pred_fallthru
        _
      // Predicated region
      $region21: #{tpu_custom_call.1} parent=11 // pred_check
        %p228 = pneg %p116
      $region22: #{tpu_custom_call.1} parent=11 // pred_check_branch
        %230 = sbr.rel (%p228) target = $region24
      $region23: #{tpu_custom_call.1} parent=11 // pred_region
        _
      $region24: #{tpu_custom_call.1} parent=11 // pred_fallthru
        _
      // Predicated region
      $region25: #{tpu_custom_call.1} parent=11 // pred_check
        %p231 = pneg %p137
      $region26: #{tpu_custom_call.1} parent=11 // pred_check_branch
        %233 = sbr.rel (%p231) target = $region28
      $region27: #{tpu_custom_call.1} parent=11 // pred_region
        _
      $region28: #{tpu_custom_call.1} parent=11 // pred_fallthru
        _
      // Predicated region
      $region29: #{tpu_custom_call.1} parent=11 // pred_check
        %p234 = pneg %p158
      $region30: #{tpu_custom_call.1} parent=11 // pred_check_branch
        %236 = sbr.rel (%p234) target = $region32
      $region31: #{tpu_custom_call.1} parent=11 // pred_region
        _
      $region32: #{tpu_custom_call.1} parent=11 // pred_fallthru
        _
      // Predicated region
      $region33: #{tpu_custom_call.1} parent=11 // pred_check
        %p237 = pneg %p179
      $region34: #{tpu_custom_call.1} parent=11 // pred_check_branch
        %239 = sbr.rel (%p237) target = $region36
      $region35: #{tpu_custom_call.1} parent=11 // pred_region
        _
      $region36: #{tpu_custom_call.1} parent=11 // pred_fallthru
        _
    $region12: #{tpu_custom_call.1} parent=5 // pred_fallthru
      _
    %p240 = scmp.lt.s32.totalorder %s13, 2
    // Predicated region
    $region37: #{tpu_custom_call.1} parent=5 // pred_check
      %p241 = pneg %p240
    $region38: #{tpu_custom_call.1} parent=5 // pred_check_branch
      %243 = sbr.rel (%p241) target = $region40
    $region39: #{tpu_custom_call.1} parent=5 // pred_region
      // Predicated region
      $region41: #{tpu_custom_call.1} parent=39 // pred_check
        %p244 = pneg %p47
      $region42: #{tpu_custom_call.1} parent=39 // pred_check_branch
        %246 = sbr.rel (%p244) target = $region44
      $region43: #{tpu_custom_call.1} parent=39 // pred_region
        %p247 = scmp.lt.s32.totalorder %s20, 1
        %s248 = scalar_select %p247, %s20, 1
        %p249 = scmp.lt.s32.totalorder %s21, 0
        %s250 = scalar_select %p249, %s21, 0
        %s251 = smul.addr %s248, 5
        %s252 = sadd.s32 %s250, %s251
        %s253 = smul.addr %s252, 8
        %s254 = scalar_lea.vmem %s0, %s253
      $region44: #{tpu_custom_call.1} parent=39 // pred_fallthru
        _
    $region40: #{tpu_custom_call.1} parent=5 // pred_fallthru
      _
    %p255 = scmp.le.s32.totalorder 1, %s13
    %p256 = scmp.lt.s32.totalorder %s13, 3
    %p257 = pnand %p255, %p256
    %p258 = pneg %p257
    // Predicated region
    $region45: #{tpu_custom_call.1} parent=5 // pred_check
      _
    $region46: #{tpu_custom_call.1} parent=5 // pred_check_branch
      %260 = sbr.rel (%p257) target = $region48
    $region47: #{tpu_custom_call.1} parent=5 // pred_region
      %s261 = ssub.s32 %s13, 1
      %p262 = scmp.lt.s32.totalorder %s22, 1
      %s263 = scalar_select %p262, %s22, 1
      %p264 = scmp.lt.s32.totalorder %s23, 0
      %s265 = scalar_select %p264, %s23, 0
      %s266 = smul.addr %s263, 5
      %s267 = sadd.s32 %s265, %s266
      %s268 = smul.addr %s267, 8
      %s269 = scalar_lea.vmem %s0, %s268
      %p270 = pneg %p53
      %p271 = pneg %p50
      %p272 = pneg %p74
      %p273 = pneg %p71
      %p274 = pneg %p95
      %p275 = pneg %p92
      %p276 = pneg %p116
      %p277 = pneg %p113
      %p278 = pneg %p137
      %p279 = pneg %p134
      %p280 = pneg %p158
      %p281 = pneg %p155
      %p282 = pneg %p179
      %p283 = pneg %p176
      %p284 = pneg %p207
      %p285 = pneg %p204
      %p286 = scmp.lt.s32.totalorder %s22, 1
      %s287 = scalar_select %p286, %s22, 1
      %p288 = scmp.lt.s32.totalorder %s23, 0
      %s289 = scalar_select %p288, %s23, 0
      %s290 = smul.addr %s287, 2
      %s291 = sadd.s32 %s289, %s290
      %s292 = smul.addr %s291, 8
      %s293 = scalar_lea.vmem %s7, %s292
      %p294 = scmp.lt.s32.totalorder %s22, 1
      %s295 = scalar_select %p294, %s22, 1
      %p296 = scmp.lt.s32.totalorder %s23, 0
      %s297 = scalar_select %p296, %s23, 0
      %s298 = smul.addr %s295, 5
      %s299 = sadd.s32 %s297, %s298
      %s300 = smul.addr %s299, 8
      %s301 = scalar_lea.vmem %s0, %s300
      %p302 = scmp.lt.s32.totalorder %s22, 1
      %s303 = scalar_select %p302, %s22, 1
      %p304 = scmp.lt.s32.totalorder %s23, 0
      %s305 = scalar_select %p304, %s23, 0
      %s306 = smul.addr %s303, 2
      %s307 = sadd.s32 %s305, %s306
      %s308 = smul.addr %s307, 8
      %s309 = scalar_lea.vmem %s7, %s308
      %v311 = vld [vmem:[%s301] sm:$0xff]
      %v312 = vld [vmem:[%s301 + $0x8] sm:$0xff]
      %v313 = vld [vmem:[%s301 + $0x10] sm:$0xff]
      %v314 = vld [vmem:[%s301 + $0x18] sm:$0xff]
      %v315 = vld [vmem:[%s301 + $0x20] sm:$0x3]
      %v316 = vpack.c.bf16 %v312, %v311
      %v317 = vpack.c.bf16 %v314, %v313
      %v318 = vpack.c.bf16 %v315, %v315
      %v319 = vld [vmem:[%s1] sm:$0xf]
      %v320 = vld [vmem:[%s1 + $0x4] sm:$0xf]
      %v321 = vld [vmem:[%s1 + $0x8] sm:$0xf]
      %v322 = vld [vmem:[%s1 + $0xc] sm:$0xf]
      %v323 = vld [vmem:[%s1 + $0x10] sm:$0xf]
      %v324 = vld [vmem:[%s1 + $0x14] sm:$0xf]
      %v325 = vld [vmem:[%s1 + $0x18] sm:$0xf]
      %v326 = vld [vmem:[%s1 + $0x1c] sm:$0xf]
      %v327 = vld [vmem:[%s1 + $0x20] sm:$0xf]
      %v328 = vld [vmem:[%s1 + $0x24] sm:$0xf]
      %v329 = vld [vmem:[%s1 + $0x28] sm:$0xf]
      %v330 = vld [vmem:[%s1 + $0x2c] sm:$0xf]
      %v331 = vld [vmem:[%s1 + $0x30] sm:$0xf]
      %v332 = vld [vmem:[%s1 + $0x34] sm:$0xf]
      %v333 = vld [vmem:[%s1 + $0x38] sm:$0xf]
      %v334 = vld [vmem:[%s1 + $0x3c] sm:$0xf]
      %v335 = vld [vmem:[%s2] sm:$0xff]
      %v336 = vld [vmem:[%s2 + $0x8] sm:$0xff]
      %v337 = vld [vmem:[%s2 + $0x10] sm:$0xff]
      %v338 = vld [vmem:[%s2 + $0x18] sm:$0xff]
      %v339 = vld [vmem:[%s2 + $0x20] sm:$0xff]
      %v340 = vld [vmem:[%s2 + $0x28] sm:$0xff]
      %v341 = vld [vmem:[%s2 + $0x30] sm:$0xff]
      %v342 = vld [vmem:[%s2 + $0x38] sm:$0xff]
      %v343 = vld [vmem:[%s2 + $0x40] sm:$0xff]
      %v344 = vld [vmem:[%s2 + $0x48] sm:$0xff]
      %v345 = vld [vmem:[%s2 + $0x50] sm:$0xff]
      %v346 = vld [vmem:[%s2 + $0x58] sm:$0xff]
      %v347 = vld [vmem:[%s2 + $0x60] sm:$0xff]
      %v348 = vld [vmem:[%s2 + $0x68] sm:$0xff]
      %v349 = vld [vmem:[%s2 + $0x70] sm:$0xff]
      %v350 = vld [vmem:[%s2 + $0x78] sm:$0xff]
      %352 = vset.pattern.permute.xlu0 0
      %353 = vperm.xlu0 %352, %v335
      %v354 = vpop.permute.xlu0 %353
      %357 = vset.pattern.permute.xlu0 0
      %358 = vperm.xlu0 %357, %v336
      %v359 = vpop.permute.xlu0 %358
      %362 = vset.pattern.permute.xlu0 0
      %363 = vperm.xlu0 %362, %v337
      %v364 = vpop.permute.xlu0 %363
      %367 = vset.pattern.permute.xlu0 0
      %368 = vperm.xlu0 %367, %v338
      %v369 = vpop.permute.xlu0 %368
      %372 = vset.pattern.permute.xlu0 0
      %373 = vperm.xlu0 %372, %v339
      %v374 = vpop.permute.xlu0 %373
      %377 = vset.pattern.permute.xlu0 0
      %378 = vperm.xlu0 %377, %v340
      %v379 = vpop.permute.xlu0 %378
      %382 = vset.pattern.permute.xlu0 0
      %383 = vperm.xlu0 %382, %v341
      %v384 = vpop.permute.xlu0 %383
      %387 = vset.pattern.permute.xlu0 0
      %388 = vperm.xlu0 %387, %v342
      %v389 = vpop.permute.xlu0 %388
      %392 = vset.pattern.permute.xlu0 0
      %393 = vperm.xlu0 %392, %v343
      %v394 = vpop.permute.xlu0 %393
      %397 = vset.pattern.permute.xlu0 0
      %398 = vperm.xlu0 %397, %v344
      %v399 = vpop.permute.xlu0 %398
      %402 = vset.pattern.permute.xlu0 0
      %403 = vperm.xlu0 %402, %v345
      %v404 = vpop.permute.xlu0 %403
      %407 = vset.pattern.permute.xlu0 0
      %408 = vperm.xlu0 %407, %v346
      %v409 = vpop.permute.xlu0 %408
      %412 = vset.pattern.permute.xlu0 0
      %413 = vperm.xlu0 %412, %v347
      %v414 = vpop.permute.xlu0 %413
      %417 = vset.pattern.permute.xlu0 0
      %418 = vperm.xlu0 %417, %v348
      %v419 = vpop.permute.xlu0 %418
      %422 = vset.pattern.permute.xlu0 0
      %423 = vperm.xlu0 %422, %v349
      %v424 = vpop.permute.xlu0 %423
      %427 = vset.pattern.permute.xlu0 0
      %428 = vperm.xlu0 %427, %v350
      %v429 = vpop.permute.xlu0 %428
      %v447 = vunpack.c.l.b16 %v319
      %v448 = vunpack.c.l.b16 %v320
      %v449 = vunpack.c.l.b16 %v321
      %v450 = vunpack.c.l.b16 %v322
      %v451 = vunpack.c.l.b16 %v323
      %v452 = vunpack.c.l.b16 %v324
      %v453 = vunpack.c.l.b16 %v325
      %v454 = vunpack.c.l.b16 %v326
      %v455 = vunpack.c.l.b16 %v327
      %v456 = vunpack.c.l.b16 %v328
      %v457 = vunpack.c.l.b16 %v329
      %v458 = vunpack.c.l.b16 %v330
      %v459 = vunpack.c.l.b16 %v331
      %v460 = vunpack.c.l.b16 %v332
      %v461 = vunpack.c.l.b16 %v333
      %v462 = vunpack.c.l.b16 %v334
      %v463 = vpack.c.b16 %v448, %v447
      %v464 = vpack.c.b16 %v450, %v449
      %v465 = vpack.c.b16 %v452, %v451
      %v466 = vpack.c.b16 %v454, %v453
      %v467 = vpack.c.b16 %v456, %v455
      %v468 = vpack.c.b16 %v458, %v457
      %v469 = vpack.c.b16 %v460, %v459
      %v470 = vpack.c.b16 %v462, %v461
      %vm471 = vcmask 277504
      %v473 = vsel %vm471, %v463, 0
      %v476 = vsel %vm471, %v464, 0
      %v479 = vsel %vm471, %v465, 0
      %v482 = vsel %vm471, %v466, 0
      %v485 = vsel %vm471, %v467, 0
      %v488 = vsel %vm471, %v468, 0
      %v491 = vsel %vm471, %v469, 0
      %v494 = vsel %vm471, %v470, 0
      %vm496 = vcmask 1040384
      %v498 = vsel %vm496, %v318, 0
      %500 = vmatprep.subr.bf16.mxu0 0
      %501 = vmatpush1.bf16.msra.mxu0 %v316
      %502 = vmatprep.subr.bf16.mxu0 0
      %503 = vmatpush1.bf16.msra.mxu0 %v317
      %504 = vmatprep.subr.bf16.mxu0 0
      %505 = vmatpush1.bf16.msra.mxu0 %v498
      %506 = vmatprep.subr.bf16.mxu0 0
      %507 = vmatpush1.bf16.msra.mxu0 0
      %508 = vmatprep.subr.bf16.mxu0 0
      %509 = vmatpush1.bf16.msra.mxu0 0
      %510 = vmatprep.subr.bf16.mxu0 0
      %511 = vmatpush1.bf16.msra.mxu0 0
      %512 = vmatprep.subr.bf16.mxu0 0
      %513 = vmatpush1.bf16.msra.mxu0 0
      %514 = vmatprep.subr.bf16.mxu0 0
      %515 = vmatpush1.bf16.msra.mxu0 0
      %516 = vmatprep.subr.bf16.mxu0 0
      %517 = vmatpush1.bf16.msra.mxu0 0
      %518 = vmatprep.subr.bf16.mxu0 0
      %519 = vmatpush1.bf16.msra.mxu0 0
      %520 = vmatprep.subr.bf16.mxu0 0
      %521 = vmatpush1.bf16.msra.mxu0 0
      %522 = vmatprep.subr.bf16.mxu0 0
      %523 = vmatpush1.bf16.msra.mxu0 0
      %524 = vmatprep.subr.bf16.mxu0 0
      %525 = vmatpush1.bf16.msra.mxu0 0
      %526 = vmatprep.subr.bf16.mxu0 0
      %527 = vmatpush1.bf16.msra.mxu0 0
      %528 = vmatprep.subr.bf16.mxu0 0
      %529 = vmatpush1.bf16.msra.mxu0 0
      %530 = vmatprep.subr.bf16.mxu0 0
      %531 = vmatpush1.bf16.msra.mxu0 0
      %532 = vmatprep.mubr.bf16.mxu0 0
      %533 = vmatmul.mubr.bf16.gmra.mrb[0].mxu0 %v473
      %v534 = vpop.f32.mrb[0].mxu0
      %v535 = vadd.f32 %v354, %v534
      %v536 = vpop.f32.mrb[0].mxu0
      %v537 = vpop.f32.mrb[0].mxu0
      %v538 = vadd.f32 %v359, %v537
      %v539 = vpop.f32.mrb[0].mxu0
      %540 = vmatprep.mubr.bf16.mxu0 0
      %541 = vmatmul.mubr.bf16.gmra.mrb[0].mxu0 %v476
      %v542 = vpop.f32.mrb[0].mxu0
      %v543 = vadd.f32 %v364, %v542
      %v544 = vpop.f32.mrb[0].mxu0
      %v545 = vpop.f32.mrb[0].mxu0
      %v546 = vadd.f32 %v369, %v545
      %v547 = vpop.f32.mrb[0].mxu0
      %548 = vmatprep.mubr.bf16.mxu0 0
      %549 = vmatmul.mubr.bf16.gmra.mrb[0].mxu0 %v479
      %v550 = vpop.f32.mrb[0].mxu0
      %v551 = vadd.f32 %v374, %v550
      %v552 = vpop.f32.mrb[0].mxu0
      %v553 = vpop.f32.mrb[0].mxu0
      %v554 = vadd.f32 %v379, %v553
      %v555 = vpop.f32.mrb[0].mxu0
      %556 = vmatprep.mubr.bf16.mxu0 0
      %557 = vmatmul.mubr.bf16.gmra.mrb[0].mxu0 %v482
      %v558 = vpop.f32.mrb[0].mxu0
      %v559 = vadd.f32 %v384, %v558
      %v560 = vpop.f32.mrb[0].mxu0
      %v561 = vpop.f32.mrb[0].mxu0
      %v562 = vadd.f32 %v389, %v561
      %v563 = vpop.f32.mrb[0].mxu0
      %564 = vmatprep.mubr.bf16.mxu0 0
      %565 = vmatmul.mubr.bf16.gmra.mrb[0].mxu0 %v485
      %v566 = vpop.f32.mrb[0].mxu0
      %v567 = vadd.f32 %v394, %v566
      %v568 = vpop.f32.mrb[0].mxu0
      %v569 = vpop.f32.mrb[0].mxu0
      %v570 = vadd.f32 %v399, %v569
      %v571 = vpop.f32.mrb[0].mxu0
      %572 = vmatprep.mubr.bf16.mxu0 0
      %573 = vmatmul.mubr.bf16.gmra.mrb[0].mxu0 %v488
      %v574 = vpop.f32.mrb[0].mxu0
      %v575 = vadd.f32 %v404, %v574
      %v576 = vpop.f32.mrb[0].mxu0
      %v577 = vpop.f32.mrb[0].mxu0
      %v578 = vadd.f32 %v409, %v577
      %v579 = vpop.f32.mrb[0].mxu0
      %580 = vmatprep.mubr.bf16.mxu0 0
      %581 = vmatmul.mubr.bf16.gmra.mrb[0].mxu0 %v491
      %v582 = vpop.f32.mrb[0].mxu0
      %v583 = vadd.f32 %v414, %v582
      %v584 = vpop.f32.mrb[0].mxu0
      %v585 = vpop.f32.mrb[0].mxu0
      %v586 = vadd.f32 %v419, %v585
      %v587 = vpop.f32.mrb[0].mxu0
      %588 = vmatprep.mubr.bf16.mxu0 0
      %589 = vmatmul.mubr.bf16.gmra.mrb[0].mxu0 %v494
      %v590 = vpop.f32.mrb[0].mxu0
      %v591 = vadd.f32 %v424, %v590
      %v592 = vpop.f32.mrb[0].mxu0
      %v593 = vpop.f32.mrb[0].mxu0
      %v594 = vadd.f32 %v429, %v593
      %v595 = vpop.f32.mrb[0].mxu0
      %596 = vdwg.mxu0
      %v597 = vmax.f32 %v535, 0.0
      %v598 = vmax.f32 %v538, 0.0
      %v599 = vmax.f32 %v543, 0.0
      %v600 = vmax.f32 %v546, 0.0
      %v601 = vmax.f32 %v551, 0.0
      %v602 = vmax.f32 %v554, 0.0
      %v603 = vmax.f32 %v559, 0.0
      %v604 = vmax.f32 %v562, 0.0
      %v605 = vmax.f32 %v567, 0.0
      %v606 = vmax.f32 %v570, 0.0
      %v607 = vmax.f32 %v575, 0.0
      %v608 = vmax.f32 %v578, 0.0
      %v609 = vmax.f32 %v583, 0.0
      %v610 = vmax.f32 %v586, 0.0
      %v611 = vmax.f32 %v591, 0.0
      %v612 = vmax.f32 %v594, 0.0
      %v613 = vld [vmem:[%s3] sm:$0xf]
      %v614 = vld [vmem:[%s3 + $0x4] sm:$0xf]
      %v615 = vld [vmem:[%s3 + $0x8] sm:$0xf]
      %v616 = vld [vmem:[%s3 + $0xc] sm:$0xf]
      %v617 = vld [vmem:[%s3 + $0x10] sm:$0xf]
      %v618 = vld [vmem:[%s3 + $0x14] sm:$0xf]
      %v619 = vld [vmem:[%s3 + $0x18] sm:$0xf]
      %v620 = vld [vmem:[%s3 + $0x1c] sm:$0xf]
      %v621 = vld [vmem:[%s3 + $0x20] sm:$0xf]
      %v622 = vld [vmem:[%s3 + $0x24] sm:$0xf]
      %v623 = vld [vmem:[%s3 + $0x28] sm:$0xf]
      %v624 = vld [vmem:[%s3 + $0x2c] sm:$0xf]
      %v625 = vld [vmem:[%s3 + $0x30] sm:$0xf]
      %v626 = vld [vmem:[%s3 + $0x34] sm:$0xf]
      %v627 = vld [vmem:[%s3 + $0x38] sm:$0xf]
      %v628 = vld [vmem:[%s3 + $0x3c] sm:$0xf]
      %v629 = vpack.c.bf16 %v598, %v597
      %v630 = vpack.c.bf16 %v600, %v599
      %v631 = vpack.c.bf16 %v602, %v601
      %v632 = vpack.c.bf16 %v604, %v603
      %v633 = vpack.c.bf16 %v606, %v605
      %v634 = vpack.c.bf16 %v608, %v607
      %v635 = vpack.c.bf16 %v610, %v609
      %v636 = vpack.c.bf16 %v612, %v611
      %v637 = vld [vmem:[%s4] sm:$0xff]
      %v638 = vld [vmem:[%s4 + $0x8] sm:$0xff]
      %v639 = vld [vmem:[%s4 + $0x10] sm:$0xff]
      %v640 = vld [vmem:[%s4 + $0x18] sm:$0xff]
      %v641 = vld [vmem:[%s4 + $0x20] sm:$0xff]
      %v642 = vld [vmem:[%s4 + $0x28] sm:$0xff]
      %v643 = vld [vmem:[%s4 + $0x30] sm:$0xff]
      %v644 = vld [vmem:[%s4 + $0x38] sm:$0xff]
      %v645 = vld [vmem:[%s4 + $0x40] sm:$0xff]
      %v646 = vld [vmem:[%s4 + $0x48] sm:$0xff]
      %v647 = vld [vmem:[%s4 + $0x50] sm:$0xff]
      %v648 = vld [vmem:[%s4 + $0x58] sm:$0xff]
      %v649 = vld [vmem:[%s4 + $0x60] sm:$0xff]
      %v650 = vld [vmem:[%s4 + $0x68] sm:$0xff]
      %v651 = vld [vmem:[%s4 + $0x70] sm:$0xff]
      %v652 = vld [vmem:[%s4 + $0x78] sm:$0xff]
      %654 = vset.pattern.permute.xlu0 0
      %655 = vperm.xlu0 %654, %v637
      %v656 = vpop.permute.xlu0 %655
      %659 = vset.pattern.permute.xlu0 0
      %660 = vperm.xlu0 %659, %v638
      %v661 = vpop.permute.xlu0 %660
      %664 = vset.pattern.permute.xlu0 0
      %665 = vperm.xlu0 %664, %v639
      %v666 = vpop.permute.xlu0 %665
      %669 = vset.pattern.permute.xlu0 0
      %670 = vperm.xlu0 %669, %v640
      %v671 = vpop.permute.xlu0 %670
      %674 = vset.pattern.permute.xlu0 0
      %675 = vperm.xlu0 %674, %v641
      %v676 = vpop.permute.xlu0 %675
      %679 = vset.pattern.permute.xlu0 0
      %680 = vperm.xlu0 %679, %v642
      %v681 = vpop.permute.xlu0 %680
      %684 = vset.pattern.permute.xlu0 0
      %685 = vperm.xlu0 %684, %v643
      %v686 = vpop.permute.xlu0 %685
      %689 = vset.pattern.permute.xlu0 0
      %690 = vperm.xlu0 %689, %v644
      %v691 = vpop.permute.xlu0 %690
      %694 = vset.pattern.permute.xlu0 0
      %695 = vperm.xlu0 %694, %v645
      %v696 = vpop.permute.xlu0 %695
      %699 = vset.pattern.permute.xlu0 0
      %700 = vperm.xlu0 %699, %v646
      %v701 = vpop.permute.xlu0 %700
      %704 = vset.pattern.permute.xlu0 0
      %705 = vperm.xlu0 %704, %v647
      %v706 = vpop.permute.xlu0 %705
      %709 = vset.pattern.permute.xlu0 0
      %710 = vperm.xlu0 %709, %v648
      %v711 = vpop.permute.xlu0 %710
      %714 = vset.pattern.permute.xlu0 0
      %715 = vperm.xlu0 %714, %v649
      %v716 = vpop.permute.xlu0 %715
      %719 = vset.pattern.permute.xlu0 0
      %720 = vperm.xlu0 %719, %v650
      %v721 = vpop.permute.xlu0 %720
      %724 = vset.pattern.permute.xlu0 0
      %725 = vperm.xlu0 %724, %v651
      %v726 = vpop.permute.xlu0 %725
      %729 = vset.pattern.permute.xlu0 0
      %730 = vperm.xlu0 %729, %v652
      %v731 = vpop.permute.xlu0 %730
      %v749 = vunpack.c.l.b16 %v613
      %v750 = vunpack.c.l.b16 %v614
      %v751 = vunpack.c.l.b16 %v615
      %v752 = vunpack.c.l.b16 %v616
      %v753 = vunpack.c.l.b16 %v617
      %v754 = vunpack.c.l.b16 %v618
      %v755 = vunpack.c.l.b16 %v619
      %v756 = vunpack.c.l.b16 %v620
      %v757 = vunpack.c.l.b16 %v621
      %v758 = vunpack.c.l.b16 %v622
      %v759 = vunpack.c.l.b16 %v623
      %v760 = vunpack.c.l.b16 %v624
      %v761 = vunpack.c.l.b16 %v625
      %v762 = vunpack.c.l.b16 %v626
      %v763 = vunpack.c.l.b16 %v627
      %v764 = vunpack.c.l.b16 %v628
      %v765 = vpack.c.b16 %v750, %v749
      %v766 = vpack.c.b16 %v752, %v751
      %v767 = vpack.c.b16 %v754, %v753
      %v768 = vpack.c.b16 %v756, %v755
      %v769 = vpack.c.b16 %v758, %v757
      %v770 = vpack.c.b16 %v760, %v759
      %v771 = vpack.c.b16 %v762, %v761
      %v772 = vpack.c.b16 %v764, %v763
      %781 = vmatprep.subr.bf16.mxu0 0
      %782 = vmatpush1.bf16.msra.mxu0 %v629
      %783 = vmatprep.subr.bf16.mxu0 0
      %784 = vmatpush1.bf16.msra.mxu0 %v630
      %785 = vmatprep.subr.bf16.mxu0 0
      %786 = vmatpush1.bf16.msra.mxu0 %v631
      %787 = vmatprep.subr.bf16.mxu0 0
      %788 = vmatpush1.bf16.msra.mxu0 %v632
      %789 = vmatprep.subr.bf16.mxu0 0
      %790 = vmatpush1.bf16.msra.mxu0 %v633
      %791 = vmatprep.subr.bf16.mxu0 0
      %792 = vmatpush1.bf16.msra.mxu0 %v634
      %793 = vmatprep.subr.bf16.mxu0 0
      %794 = vmatpush1.bf16.msra.mxu0 %v635
      %795 = vmatprep.subr.bf16.mxu0 0
      %796 = vmatpush1.bf16.msra.mxu0 %v636
      %797 = vmatprep.subr.bf16.mxu0 0
      %798 = vmatpush1.bf16.msra.mxu0 0
      %799 = vmatprep.subr.bf16.mxu0 0
      %800 = vmatpush1.bf16.msra.mxu0 0
      %801 = vmatprep.subr.bf16.mxu0 0
      %802 = vmatpush1.bf16.msra.mxu0 0
      %803 = vmatprep.subr.bf16.mxu0 0
      %804 = vmatpush1.bf16.msra.mxu0 0
      %805 = vmatprep.subr.bf16.mxu0 0
      %806 = vmatpush1.bf16.msra.mxu0 0
      %807 = vmatprep.subr.bf16.mxu0 0
      %808 = vmatpush1.bf16.msra.mxu0 0
      %809 = vmatprep.subr.bf16.mxu0 0
      %810 = vmatpush1.bf16.msra.mxu0 0
      %811 = vmatprep.subr.bf16.mxu0 0
      %812 = vmatpush1.bf16.msra.mxu0 0
      %813 = vmatprep.mubr.bf16.mxu0 0
      %814 = vmatmul.mubr.bf16.gmra.mrb[0].mxu0 %v765
      %v815 = vpop.f32.mrb[0].mxu0
      %v816 = vadd.f32 %v656, %v815
      %v817 = vpop.f32.mrb[0].mxu0
      %v818 = vpop.f32.mrb[0].mxu0
      %v819 = vadd.f32 %v661, %v818
      %v820 = vpop.f32.mrb[0].mxu0
      %821 = vmatprep.mubr.bf16.mxu0 0
      %822 = vmatmul.mubr.bf16.gmra.mrb[0].mxu0 %v766
      %v823 = vpop.f32.mrb[0].mxu0
      %v824 = vadd.f32 %v666, %v823
      %v825 = vpop.f32.mrb[0].mxu0
      %v826 = vpop.f32.mrb[0].mxu0
      %v827 = vadd.f32 %v671, %v826
      %v828 = vpop.f32.mrb[0].mxu0
      %829 = vmatprep.mubr.bf16.mxu0 0
      %830 = vmatmul.mubr.bf16.gmra.mrb[0].mxu0 %v767
      %v831 = vpop.f32.mrb[0].mxu0
      %v832 = vadd.f32 %v676, %v831
      %v833 = vpop.f32.mrb[0].mxu0
      %v834 = vpop.f32.mrb[0].mxu0
      %v835 = vadd.f32 %v681, %v834
      %v836 = vpop.f32.mrb[0].mxu0
      %837 = vmatprep.mubr.bf16.mxu0 0
      %838 = vmatmul.mubr.bf16.gmra.mrb[0].mxu0 %v768
      %v839 = vpop.f32.mrb[0].mxu0
      %v840 = vadd.f32 %v686, %v839
      %v841 = vpop.f32.mrb[0].mxu0
      %v842 = vpop.f32.mrb[0].mxu0
      %v843 = vadd.f32 %v691, %v842
      %v844 = vpop.f32.mrb[0].mxu0
      %845 = vmatprep.mubr.bf16.mxu0 0
      %846 = vmatmul.mubr.bf16.gmra.mrb[0].mxu0 %v769
      %v847 = vpop.f32.mrb[0].mxu0
      %v848 = vadd.f32 %v696, %v847
      %v849 = vpop.f32.mrb[0].mxu0
      %v850 = vpop.f32.mrb[0].mxu0
      %v851 = vadd.f32 %v701, %v850
      %v852 = vpop.f32.mrb[0].mxu0
      %853 = vmatprep.mubr.bf16.mxu0 0
      %854 = vmatmul.mubr.bf16.gmra.mrb[0].mxu0 %v770
      %v855 = vpop.f32.mrb[0].mxu0
      %v856 = vadd.f32 %v706, %v855
      %v857 = vpop.f32.mrb[0].mxu0
      %v858 = vpop.f32.mrb[0].mxu0
      %v859 = vadd.f32 %v711, %v858
      %v860 = vpop.f32.mrb[0].mxu0
      %861 = vmatprep.mubr.bf16.mxu0 0
      %862 = vmatmul.mubr.bf16.gmra.mrb[0].mxu0 %v771
      %v863 = vpop.f32.mrb[0].mxu0
      %v864 = vadd.f32 %v716, %v863
      %v865 = vpop.f32.mrb[0].mxu0
      %v866 = vpop.f32.mrb[0].mxu0
      %v867 = vadd.f32 %v721, %v866
      %v868 = vpop.f32.mrb[0].mxu0
      %869 = vmatprep.mubr.bf16.mxu0 0
      %870 = vmatmul.mubr.bf16.gmra.mrb[0].mxu0 %v772
      %v871 = vpop.f32.mrb[0].mxu0
      %v872 = vadd.f32 %v726, %v871
      %v873 = vpop.f32.mrb[0].mxu0
      %v874 = vpop.f32.mrb[0].mxu0
      %v875 = vadd.f32 %v731, %v874
      %v876 = vpop.f32.mrb[0].mxu0
      %877 = vdwg.mxu0
      %v878 = vmax.f32 %v816, 0.0
      %v879 = vmax.f32 %v819, 0.0
      %v880 = vmax.f32 %v824, 0.0
      %v881 = vmax.f32 %v827, 0.0
      %v882 = vmax.f32 %v832, 0.0
      %v883 = vmax.f32 %v835, 0.0
      %v884 = vmax.f32 %v840, 0.0
      %v885 = vmax.f32 %v843, 0.0
      %v886 = vmax.f32 %v848, 0.0
      %v887 = vmax.f32 %v851, 0.0
      %v888 = vmax.f32 %v856, 0.0
      %v889 = vmax.f32 %v859, 0.0
      %v890 = vmax.f32 %v864, 0.0
      %v891 = vmax.f32 %v867, 0.0
      %v892 = vmax.f32 %v872, 0.0
      %v893 = vmax.f32 %v875, 0.0
      %s894 = scalar_lea.vmem %s3, 64
      %v895 = vld [vmem:[%s894] sm:$0xf]
      %v896 = vld [vmem:[%s894 + $0x4] sm:$0xf]
      %v897 = vld [vmem:[%s894 + $0x8] sm:$0xf]
      %v898 = vld [vmem:[%s894 + $0xc] sm:$0xf]
      %v899 = vld [vmem:[%s894 + $0x10] sm:$0xf]
      %v900 = vld [vmem:[%s894 + $0x14] sm:$0xf]
      %v901 = vld [vmem:[%s894 + $0x18] sm:$0xf]
      %v902 = vld [vmem:[%s894 + $0x1c] sm:$0xf]
      %v903 = vld [vmem:[%s894 + $0x20] sm:$0xf]
      %v904 = vld [vmem:[%s894 + $0x24] sm:$0xf]
      %v905 = vld [vmem:[%s894 + $0x28] sm:$0xf]
      %v906 = vld [vmem:[%s894 + $0x2c] sm:$0xf]
      %v907 = vld [vmem:[%s894 + $0x30] sm:$0xf]
      %v908 = vld [vmem:[%s894 + $0x34] sm:$0xf]
      %v909 = vld [vmem:[%s894 + $0x38] sm:$0xf]
      %v910 = vld [vmem:[%s894 + $0x3c] sm:$0xf]
      %v911 = vpack.c.bf16 %v879, %v878
      %v912 = vpack.c.bf16 %v881, %v880
      %v913 = vpack.c.bf16 %v883, %v882
      %v914 = vpack.c.bf16 %v885, %v884
      %v915 = vpack.c.bf16 %v887, %v886
      %v916 = vpack.c.bf16 %v889, %v888
      %v917 = vpack.c.bf16 %v891, %v890
      %v918 = vpack.c.bf16 %v893, %v892
      %s919 = scalar_lea.vmem %s4, 128
      %v920 = vld [vmem:[%s919] sm:$0xff]
      %v921 = vld [vmem:[%s919 + $0x8] sm:$0xff]
      %v922 = vld [vmem:[%s919 + $0x10] sm:$0xff]
      %v923 = vld [vmem:[%s919 + $0x18] sm:$0xff]
      %v924 = vld [vmem:[%s919 + $0x20] sm:$0xff]
      %v925 = vld [vmem:[%s919 + $0x28] sm:$0xff]
      %v926 = vld [vmem:[%s919 + $0x30] sm:$0xff]
      %v927 = vld [vmem:[%s919 + $0x38] sm:$0xff]
      %v928 = vld [vmem:[%s919 + $0x40] sm:$0xff]
      %v929 = vld [vmem:[%s919 + $0x48] sm:$0xff]
      %v930 = vld [vmem:[%s919 + $0x50] sm:$0xff]
      %v931 = vld [vmem:[%s919 + $0x58] sm:$0xff]
      %v932 = vld [vmem:[%s919 + $0x60] sm:$0xff]
      %v933 = vld [vmem:[%s919 + $0x68] sm:$0xff]
      %v934 = vld [vmem:[%s919 + $0x70] sm:$0xff]
      %v935 = vld [vmem:[%s919 + $0x78] sm:$0xff]
      %937 = vset.pattern.permute.xlu0 0
      %938 = vperm.xlu0 %937, %v920
      %v939 = vpop.permute.xlu0 %938
      %942 = vset.pattern.permute.xlu0 0
      %943 = vperm.xlu0 %942, %v921
      %v944 = vpop.permute.xlu0 %943
      %947 = vset.pattern.permute.xlu0 0
      %948 = vperm.xlu0 %947, %v922
      %v949 = vpop.permute.xlu0 %948
      %952 = vset.pattern.permute.xlu0 0
      %953 = vperm.xlu0 %952, %v923
      %v954 = vpop.permute.xlu0 %953
      %957 = vset.pattern.permute.xlu0 0
      %958 = vperm.xlu0 %957, %v924
      %v959 = vpop.permute.xlu0 %958
      %962 = vset.pattern.permute.xlu0 0
      %963 = vperm.xlu0 %962, %v925
      %v964 = vpop.permute.xlu0 %963
      %967 = vset.pattern.permute.xlu0 0
      %968 = vperm.xlu0 %967, %v926
      %v969 = vpop.permute.xlu0 %968
      %972 = vset.pattern.permute.xlu0 0
      %973 = vperm.xlu0 %972, %v927
      %v974 = vpop.permute.xlu0 %973
      %977 = vset.pattern.permute.xlu0 0
      %978 = vperm.xlu0 %977, %v928
      %v979 = vpop.permute.xlu0 %978
      %982 = vset.pattern.permute.xlu0 0
      %983 = vperm.xlu0 %982, %v929
      %v984 = vpop.permute.xlu0 %983
      %987 = vset.pattern.permute.xlu0 0
      %988 = vperm.xlu0 %987, %v930
      %v989 = vpop.permute.xlu0 %988
      %992 = vset.pattern.permute.xlu0 0
      %993 = vperm.xlu0 %992, %v931
      %v994 = vpop.permute.xlu0 %993
      %997 = vset.pattern.permute.xlu0 0
      %998 = vperm.xlu0 %997, %v932
      %v999 = vpop.permute.xlu0 %998
      %1002 = vset.pattern.permute.xlu0 0
      %1003 = vperm.xlu0 %1002, %v933
      %v1004 = vpop.permute.xlu0 %1003
      %1007 = vset.pattern.permute.xlu0 0
      %1008 = vperm.xlu0 %1007, %v934
      %v1009 = vpop.permute.xlu0 %1008
      %1012 = vset.pattern.permute.xlu0 0
      %1013 = vperm.xlu0 %1012, %v935
      %v1014 = vpop.permute.xlu0 %1013
      %v1032 = vunpack.c.l.b16 %v895
      %v1033 = vunpack.c.l.b16 %v896
      %v1034 = vunpack.c.l.b16 %v897
      %v1035 = vunpack.c.l.b16 %v898
      %v1036 = vunpack.c.l.b16 %v899
      %v1037 = vunpack.c.l.b16 %v900
      %v1038 = vunpack.c.l.b16 %v901
      %v1039 = vunpack.c.l.b16 %v902
      %v1040 = vunpack.c.l.b16 %v903
      %v1041 = vunpack.c.l.b16 %v904
      %v1042 = vunpack.c.l.b16 %v905
      %v1043 = vunpack.c.l.b16 %v906
      %v1044 = vunpack.c.l.b16 %v907
      %v1045 = vunpack.c.l.b16 %v908
      %v1046 = vunpack.c.l.b16 %v909
      %v1047 = vunpack.c.l.b16 %v910
      %v1048 = vpack.c.b16 %v1033, %v1032
      %v1049 = vpack.c.b16 %v1035, %v1034
      %v1050 = vpack.c.b16 %v1037, %v1036
      %v1051 = vpack.c.b16 %v1039, %v1038
      %v1052 = vpack.c.b16 %v1041, %v1040
      %v1053 = vpack.c.b16 %v1043, %v1042
      %v1054 = vpack.c.b16 %v1045, %v1044
      %v1055 = vpack.c.b16 %v1047, %v1046
      %1064 = vmatprep.subr.bf16.mxu0 0
      %1065 = vmatpush1.bf16.msra.mxu0 %v911
      %1066 = vmatprep.subr.bf16.mxu0 0
      %1067 = vmatpush1.bf16.msra.mxu0 %v912
      %1068 = vmatprep.subr.bf16.mxu0 0
      %1069 = vmatpush1.bf16.msra.mxu0 %v913
      %1070 = vmatprep.subr.bf16.mxu0 0
      %1071 = vmatpush1.bf16.msra.mxu0 %v914
      %1072 = vmatprep.subr.bf16.mxu0 0
      %1073 = vmatpush1.bf16.msra.mxu0 %v915
      %1074 = vmatprep.subr.bf16.mxu0 0
      %1075 = vmatpush1.bf16.msra.mxu0 %v916
      %1076 = vmatprep.subr.bf16.mxu0 0
      %1077 = vmatpush1.bf16.msra.mxu0 %v917
      %1078 = vmatprep.subr.bf16.mxu0 0
      %1079 = vmatpush1.bf16.msra.mxu0 %v918
      %1080 = vmatprep.subr.bf16.mxu0 0
      %1081 = vmatpush1.bf16.msra.mxu0 0
      %1082 = vmatprep.subr.bf16.mxu0 0
      %1083 = vmatpush1.bf16.msra.mxu0 0
      %1084 = vmatprep.subr.bf16.mxu0 0
      %1085 = vmatpush1.bf16.msra.mxu0 0
      %1086 = vmatprep.subr.bf16.mxu0 0
      %1087 = vmatpush1.bf16.msra.mxu0 0
      %1088 = vmatprep.subr.bf16.mxu0 0
      %1089 = vmatpush1.bf16.msra.mxu0 0
      %1090 = vmatprep.subr.bf16.mxu0 0
      %1091 = vmatpush1.bf16.msra.mxu0 0
      %1092 = vmatprep.subr.bf16.mxu0 0
      %1093 = vmatpush1.bf16.msra.mxu0 0
      %1094 = vmatprep.subr.bf16.mxu0 0
      %1095 = vmatpush1.bf16.msra.mxu0 0
      %1096 = vmatprep.mubr.bf16.mxu0 0
      %1097 = vmatmul.mubr.bf16.gmra.mrb[0].mxu0 %v1048
      %v1098 = vpop.f32.mrb[0].mxu0
      %v1099 = vadd.f32 %v939, %v1098
      %v1100 = vpop.f32.mrb[0].mxu0
      %v1101 = vpop.f32.mrb[0].mxu0
      %v1102 = vadd.f32 %v944, %v1101
      %v1103 = vpop.f32.mrb[0].mxu0
      %1104 = vmatprep.mubr.bf16.mxu0 0
      %1105 = vmatmul.mubr.bf16.gmra.mrb[0].mxu0 %v1049
      %v1106 = vpop.f32.mrb[0].mxu0
      %v1107 = vadd.f32 %v949, %v1106
      %v1108 = vpop.f32.mrb[0].mxu0
      %v1109 = vpop.f32.mrb[0].mxu0
      %v1110 = vadd.f32 %v954, %v1109
      %v1111 = vpop.f32.mrb[0].mxu0
      %1112 = vmatprep.mubr.bf16.mxu0 0
      %1113 = vmatmul.mubr.bf16.gmra.mrb[0].mxu0 %v1050
      %v1114 = vpop.f32.mrb[0].mxu0
      %v1115 = vadd.f32 %v959, %v1114
      %v1116 = vpop.f32.mrb[0].mxu0
      %v1117 = vpop.f32.mrb[0].mxu0
      %v1118 = vadd.f32 %v964, %v1117
      %v1119 = vpop.f32.mrb[0].mxu0
      %1120 = vmatprep.mubr.bf16.mxu0 0
      %1121 = vmatmul.mubr.bf16.gmra.mrb[0].mxu0 %v1051
      %v1122 = vpop.f32.mrb[0].mxu0
      %v1123 = vadd.f32 %v969, %v1122
      %v1124 = vpop.f32.mrb[0].mxu0
      %v1125 = vpop.f32.mrb[0].mxu0
      %v1126 = vadd.f32 %v974, %v1125
      %v1127 = vpop.f32.mrb[0].mxu0
      %1128 = vmatprep.mubr.bf16.mxu0 0
      %1129 = vmatmul.mubr.bf16.gmra.mrb[0].mxu0 %v1052
      %v1130 = vpop.f32.mrb[0].mxu0
      %v1131 = vadd.f32 %v979, %v1130
      %v1132 = vpop.f32.mrb[0].mxu0
      %v1133 = vpop.f32.mrb[0].mxu0
      %v1134 = vadd.f32 %v984, %v1133
      %v1135 = vpop.f32.mrb[0].mxu0
      %1136 = vmatprep.mubr.bf16.mxu0 0
      %1137 = vmatmul.mubr.bf16.gmra.mrb[0].mxu0 %v1053
      %v1138 = vpop.f32.mrb[0].mxu0
      %v1139 = vadd.f32 %v989, %v1138
      %v1140 = vpop.f32.mrb[0].mxu0
      %v1141 = vpop.f32.mrb[0].mxu0
      %v1142 = vadd.f32 %v994, %v1141
      %v1143 = vpop.f32.mrb[0].mxu0
      %1144 = vmatprep.mubr.bf16.mxu0 0
      %1145 = vmatmul.mubr.bf16.gmra.mrb[0].mxu0 %v1054
      %v1146 = vpop.f32.mrb[0].mxu0
      %v1147 = vadd.f32 %v999, %v1146
      %v1148 = vpop.f32.mrb[0].mxu0
      %v1149 = vpop.f32.mrb[0].mxu0
      %v1150 = vadd.f32 %v1004, %v1149
      %v1151 = vpop.f32.mrb[0].mxu0
      %1152 = vmatprep.mubr.bf16.mxu0 0
      %1153 = vmatmul.mubr.bf16.gmra.mrb[0].mxu0 %v1055
      %v1154 = vpop.f32.mrb[0].mxu0
      %v1155 = vadd.f32 %v1009, %v1154
      %v1156 = vpop.f32.mrb[0].mxu0
      %v1157 = vpop.f32.mrb[0].mxu0
      %v1158 = vadd.f32 %v1014, %v1157
      %v1159 = vpop.f32.mrb[0].mxu0
      %1160 = vdwg.mxu0
      %v1161 = vmax.f32 %v1099, 0.0
      %v1162 = vmax.f32 %v1102, 0.0
      %v1163 = vmax.f32 %v1107, 0.0
      %v1164 = vmax.f32 %v1110, 0.0
      %v1165 = vmax.f32 %v1115, 0.0
      %v1166 = vmax.f32 %v1118, 0.0
      %v1167 = vmax.f32 %v1123, 0.0
      %v1168 = vmax.f32 %v1126, 0.0
      %v1169 = vmax.f32 %v1131, 0.0
      %v1170 = vmax.f32 %v1134, 0.0
      %v1171 = vmax.f32 %v1139, 0.0
      %v1172 = vmax.f32 %v1142, 0.0
      %v1173 = vmax.f32 %v1147, 0.0
      %v1174 = vmax.f32 %v1150, 0.0
      %v1175 = vmax.f32 %v1155, 0.0
      %v1176 = vmax.f32 %v1158, 0.0
      %v1177 = vadd.f32 %v597, %v1161
      %v1178 = vadd.f32 %v598, %v1162
      %v1179 = vadd.f32 %v599, %v1163
      %v1180 = vadd.f32 %v600, %v1164
      %v1181 = vadd.f32 %v601, %v1165
      %v1182 = vadd.f32 %v602, %v1166
      %v1183 = vadd.f32 %v603, %v1167
      %v1184 = vadd.f32 %v604, %v1168
      %v1185 = vadd.f32 %v605, %v1169
      %v1186 = vadd.f32 %v606, %v1170
      %v1187 = vadd.f32 %v607, %v1171
      %v1188 = vadd.f32 %v608, %v1172
      %v1189 = vadd.f32 %v609, %v1173
      %v1190 = vadd.f32 %v610, %v1174
      %v1191 = vadd.f32 %v611, %v1175
      %v1192 = vadd.f32 %v612, %v1176
      %s1193 = scalar_lea.vmem %s3, 128
      %v1194 = vld [vmem:[%s1193] sm:$0xf]
      %v1195 = vld [vmem:[%s1193 + $0x4] sm:$0xf]
      %v1196 = vld [vmem:[%s1193 + $0x8] sm:$0xf]
      %v1197 = vld [vmem:[%s1193 + $0xc] sm:$0xf]
      %v1198 = vld [vmem:[%s1193 + $0x10] sm:$0xf]
      %v1199 = vld [vmem:[%s1193 + $0x14] sm:$0xf]
      %v1200 = vld [vmem:[%s1193 + $0x18] sm:$0xf]
      %v1201 = vld [vmem:[%s1193 + $0x1c] sm:$0xf]
      %v1202 = vld [vmem:[%s1193 + $0x20] sm:$0xf]
      %v1203 = vld [vmem:[%s1193 + $0x24] sm:$0xf]
      %v1204 = vld [vmem:[%s1193 + $0x28] sm:$0xf]
      %v1205 = vld [vmem:[%s1193 + $0x2c] sm:$0xf]
      %v1206 = vld [vmem:[%s1193 + $0x30] sm:$0xf]
      %v1207 = vld [vmem:[%s1193 + $0x34] sm:$0xf]
      %v1208 = vld [vmem:[%s1193 + $0x38] sm:$0xf]
      %v1209 = vld [vmem:[%s1193 + $0x3c] sm:$0xf]
      %v1210 = vpack.c.bf16 %v1178, %v1177
      %v1211 = vpack.c.bf16 %v1180, %v1179
      %v1212 = vpack.c.bf16 %v1182, %v1181
      %v1213 = vpack.c.bf16 %v1184, %v1183
      %v1214 = vpack.c.bf16 %v1186, %v1185
      %v1215 = vpack.c.bf16 %v1188, %v1187
      %v1216 = vpack.c.bf16 %v1190, %v1189
      %v1217 = vpack.c.bf16 %v1192, %v1191
      %s1218 = scalar_lea.vmem %s4, 256
      %v1219 = vld [vmem:[%s1218] sm:$0xff]
      %v1220 = vld [vmem:[%s1218 + $0x8] sm:$0xff]
      %v1221 = vld [vmem:[%s1218 + $0x10] sm:$0xff]
      %v1222 = vld [vmem:[%s1218 + $0x18] sm:$0xff]
      %v1223 = vld [vmem:[%s1218 + $0x20] sm:$0xff]
      %v1224 = vld [vmem:[%s1218 + $0x28] sm:$0xff]
      %v1225 = vld [vmem:[%s1218 + $0x30] sm:$0xff]
      %v1226 = vld [vmem:[%s1218 + $0x38] sm:$0xff]
      %v1227 = vld [vmem:[%s1218 + $0x40] sm:$0xff]
      %v1228 = vld [vmem:[%s1218 + $0x48] sm:$0xff]
      %v1229 = vld [vmem:[%s1218 + $0x50] sm:$0xff]
      %v1230 = vld [vmem:[%s1218 + $0x58] sm:$0xff]
      %v1231 = vld [vmem:[%s1218 + $0x60] sm:$0xff]
      %v1232 = vld [vmem:[%s1218 + $0x68] sm:$0xff]
      %v1233 = vld [vmem:[%s1218 + $0x70] sm:$0xff]
      %v1234 = vld [vmem:[%s1218 + $0x78] sm:$0xff]
      %1236 = vset.pattern.permute.xlu0 0
      %1237 = vperm.xlu0 %1236, %v1219
      %v1238 = vpop.permute.xlu0 %1237
      %1241 = vset.pattern.permute.xlu0 0
      %1242 = vperm.xlu0 %1241, %v1220
      %v1243 = vpop.permute.xlu0 %1242
      %1246 = vset.pattern.permute.xlu0 0
      %1247 = vperm.xlu0 %1246, %v1221
      %v1248 = vpop.permute.xlu0 %1247
      %1251 = vset.pattern.permute.xlu0 0
      %1252 = vperm.xlu0 %1251, %v1222
      %v1253 = vpop.permute.xlu0 %1252
      %1256 = vset.pattern.permute.xlu0 0
      %1257 = vperm.xlu0 %1256, %v1223
      %v1258 = vpop.permute.xlu0 %1257
      %1261 = vset.pattern.permute.xlu0 0
      %1262 = vperm.xlu0 %1261, %v1224
      %v1263 = vpop.permute.xlu0 %1262
      %1266 = vset.pattern.permute.xlu0 0
      %1267 = vperm.xlu0 %1266, %v1225
      %v1268 = vpop.permute.xlu0 %1267
      %1271 = vset.pattern.permute.xlu0 0
      %1272 = vperm.xlu0 %1271, %v1226
      %v1273 = vpop.permute.xlu0 %1272
      %1276 = vset.pattern.permute.xlu0 0
      %1277 = vperm.xlu0 %1276, %v1227
      %v1278 = vpop.permute.xlu0 %1277
      %1281 = vset.pattern.permute.xlu0 0
      %1282 = vperm.xlu0 %1281, %v1228
      %v1283 = vpop.permute.xlu0 %1282
      %1286 = vset.pattern.permute.xlu0 0
      %1287 = vperm.xlu0 %1286, %v1229
      %v1288 = vpop.permute.xlu0 %1287
      %1291 = vset.pattern.permute.xlu0 0
      %1292 = vperm.xlu0 %1291, %v1230
      %v1293 = vpop.permute.xlu0 %1292
      %1296 = vset.pattern.permute.xlu0 0
      %1297 = vperm.xlu0 %1296, %v1231
      %v1298 = vpop.permute.xlu0 %1297
      %1301 = vset.pattern.permute.xlu0 0
      %1302 = vperm.xlu0 %1301, %v1232
      %v1303 = vpop.permute.xlu0 %1302
      %1306 = vset.pattern.permute.xlu0 0
      %1307 = vperm.xlu0 %1306, %v1233
      %v1308 = vpop.permute.xlu0 %1307
      %1311 = vset.pattern.permute.xlu0 0
      %1312 = vperm.xlu0 %1311, %v1234
      %v1313 = vpop.permute.xlu0 %1312
      %v1331 = vunpack.c.l.b16 %v1194
      %v1332 = vunpack.c.l.b16 %v1195
      %v1333 = vunpack.c.l.b16 %v1196
      %v1334 = vunpack.c.l.b16 %v1197
      %v1335 = vunpack.c.l.b16 %v1198
      %v1336 = vunpack.c.l.b16 %v1199
      %v1337 = vunpack.c.l.b16 %v1200
      %v1338 = vunpack.c.l.b16 %v1201
      %v1339 = vunpack.c.l.b16 %v1202
      %v1340 = vunpack.c.l.b16 %v1203
      %v1341 = vunpack.c.l.b16 %v1204
      %v1342 = vunpack.c.l.b16 %v1205
      %v1343 = vunpack.c.l.b16 %v1206
      %v1344 = vunpack.c.l.b16 %v1207
      %v1345 = vunpack.c.l.b16 %v1208
      %v1346 = vunpack.c.l.b16 %v1209
      %v1347 = vpack.c.b16 %v1332, %v1331
      %v1348 = vpack.c.b16 %v1334, %v1333
      %v1349 = vpack.c.b16 %v1336, %v1335
      %v1350 = vpack.c.b16 %v1338, %v1337
      %v1351 = vpack.c.b16 %v1340, %v1339
      %v1352 = vpack.c.b16 %v1342, %v1341
      %v1353 = vpack.c.b16 %v1344, %v1343
      %v1354 = vpack.c.b16 %v1346, %v1345
      %1363 = vmatprep.subr.bf16.mxu0 0
      %1364 = vmatpush1.bf16.msra.mxu0 %v1210
      %1365 = vmatprep.subr.bf16.mxu0 0
      %1366 = vmatpush1.bf16.msra.mxu0 %v1211
      %1367 = vmatprep.subr.bf16.mxu0 0
      %1368 = vmatpush1.bf16.msra.mxu0 %v1212
      %1369 = vmatprep.subr.bf16.mxu0 0
      %1370 = vmatpush1.bf16.msra.mxu0 %v1213
      %1371 = vmatprep.subr.bf16.mxu0 0
      %1372 = vmatpush1.bf16.msra.mxu0 %v1214
      %1373 = vmatprep.subr.bf16.mxu0 0
      %1374 = vmatpush1.bf16.msra.mxu0 %v1215
      %1375 = vmatprep.subr.bf16.mxu0 0
      %1376 = vmatpush1.bf16.msra.mxu0 %v1216
      %1377 = vmatprep.subr.bf16.mxu0 0
      %1378 = vmatpush1.bf16.msra.mxu0 %v1217
      %1379 = vmatprep.subr.bf16.mxu0 0
      %1380 = vmatpush1.bf16.msra.mxu0 0
      %1381 = vmatprep.subr.bf16.mxu0 0
      %1382 = vmatpush1.bf16.msra.mxu0 0
      %1383 = vmatprep.subr.bf16.mxu0 0
      %1384 = vmatpush1.bf16.msra.mxu0 0
      %1385 = vmatprep.subr.bf16.mxu0 0
      %1386 = vmatpush1.bf16.msra.mxu0 0
      %1387 = vmatprep.subr.bf16.mxu0 0
      %1388 = vmatpush1.bf16.msra.mxu0 0
      %1389 = vmatprep.subr.bf16.mxu0 0
      %1390 = vmatpush1.bf16.msra.mxu0 0
      %1391 = vmatprep.subr.bf16.mxu0 0
      %1392 = vmatpush1.bf16.msra.mxu0 0
      %1393 = vmatprep.subr.bf16.mxu0 0
      %1394 = vmatpush1.bf16.msra.mxu0 0
      %1395 = vmatprep.mubr.bf16.mxu0 0
      %1396 = vmatmul.mubr.bf16.gmra.mrb[0].mxu0 %v1347
      %v1397 = vpop.f32.mrb[0].mxu0
      %v1398 = vadd.f32 %v1238, %v1397
      %v1399 = vpop.f32.mrb[0].mxu0
      %v1400 = vpop.f32.mrb[0].mxu0
      %v1401 = vadd.f32 %v1243, %v1400
      %v1402 = vpop.f32.mrb[0].mxu0
      %1403 = vmatprep.mubr.bf16.mxu0 0
      %1404 = vmatmul.mubr.bf16.gmra.mrb[0].mxu0 %v1348
      %v1405 = vpop.f32.mrb[0].mxu0
      %v1406 = vadd.f32 %v1248, %v1405
      %v1407 = vpop.f32.mrb[0].mxu0
      %v1408 = vpop.f32.mrb[0].mxu0
      %v1409 = vadd.f32 %v1253, %v1408
      %v1410 = vpop.f32.mrb[0].mxu0
      %1411 = vmatprep.mubr.bf16.mxu0 0
      %1412 = vmatmul.mubr.bf16.gmra.mrb[0].mxu0 %v1349
      %v1413 = vpop.f32.mrb[0].mxu0
      %v1414 = vadd.f32 %v1258, %v1413
      %v1415 = vpop.f32.mrb[0].mxu0
      %v1416 = vpop.f32.mrb[0].mxu0
      %v1417 = vadd.f32 %v1263, %v1416
      %v1418 = vpop.f32.mrb[0].mxu0
      %1419 = vmatprep.mubr.bf16.mxu0 0
      %1420 = vmatmul.mubr.bf16.gmra.mrb[0].mxu0 %v1350
      %v1421 = vpop.f32.mrb[0].mxu0
      %v1422 = vadd.f32 %v1268, %v1421
      %v1423 = vpop.f32.mrb[0].mxu0
      %v1424 = vpop.f32.mrb[0].mxu0
      %v1425 = vadd.f32 %v1273, %v1424
      %v1426 = vpop.f32.mrb[0].mxu0
      %1427 = vmatprep.mubr.bf16.mxu0 0
      %1428 = vmatmul.mubr.bf16.gmra.mrb[0].mxu0 %v1351
      %v1429 = vpop.f32.mrb[0].mxu0
      %v1430 = vadd.f32 %v1278, %v1429
      %v1431 = vpop.f32.mrb[0].mxu0
      %v1432 = vpop.f32.mrb[0].mxu0
      %v1433 = vadd.f32 %v1283, %v1432
      %v1434 = vpop.f32.mrb[0].mxu0
      %1435 = vmatprep.mubr.bf16.mxu0 0
      %1436 = vmatmul.mubr.bf16.gmra.mrb[0].mxu0 %v1352
      %v1437 = vpop.f32.mrb[0].mxu0
      %v1438 = vadd.f32 %v1288, %v1437
      %v1439 = vpop.f32.mrb[0].mxu0
      %v1440 = vpop.f32.mrb[0].mxu0
      %v1441 = vadd.f32 %v1293, %v1440
      %v1442 = vpop.f32.mrb[0].mxu0
      %1443 = vmatprep.mubr.bf16.mxu0 0
      %1444 = vmatmul.mubr.bf16.gmra.mrb[0].mxu0 %v1353
      %v1445 = vpop.f32.mrb[0].mxu0
      %v1446 = vadd.f32 %v1298, %v1445
      %v1447 = vpop.f32.mrb[0].mxu0
      %v1448 = vpop.f32.mrb[0].mxu0
      %v1449 = vadd.f32 %v1303, %v1448
      %v1450 = vpop.f32.mrb[0].mxu0
      %1451 = vmatprep.mubr.bf16.mxu0 0
      %1452 = vmatmul.mubr.bf16.gmra.mrb[0].mxu0 %v1354
      %v1453 = vpop.f32.mrb[0].mxu0
      %v1454 = vadd.f32 %v1308, %v1453
      %v1455 = vpop.f32.mrb[0].mxu0
      %v1456 = vpop.f32.mrb[0].mxu0
      %v1457 = vadd.f32 %v1313, %v1456
      %v1458 = vpop.f32.mrb[0].mxu0
      %1459 = vdwg.mxu0
      %v1460 = vmax.f32 %v1398, 0.0
      %v1461 = vmax.f32 %v1401, 0.0
      %v1462 = vmax.f32 %v1406, 0.0
      %v1463 = vmax.f32 %v1409, 0.0
      %v1464 = vmax.f32 %v1414, 0.0
      %v1465 = vmax.f32 %v1417, 0.0
      %v1466 = vmax.f32 %v1422, 0.0
      %v1467 = vmax.f32 %v1425, 0.0
      %v1468 = vmax.f32 %v1430, 0.0
      %v1469 = vmax.f32 %v1433, 0.0
      %v1470 = vmax.f32 %v1438, 0.0
      %v1471 = vmax.f32 %v1441, 0.0
      %v1472 = vmax.f32 %v1446, 0.0
      %v1473 = vmax.f32 %v1449, 0.0
      %v1474 = vmax.f32 %v1454, 0.0
      %v1475 = vmax.f32 %v1457, 0.0
      %s1476 = scalar_lea.vmem %s3, 192
      %v1477 = vld [vmem:[%s1476] sm:$0xf]
      %v1478 = vld [vmem:[%s1476 + $0x4] sm:$0xf]
      %v1479 = vld [vmem:[%s1476 + $0x8] sm:$0xf]
      %v1480 = vld [vmem:[%s1476 + $0xc] sm:$0xf]
      %v1481 = vld [vmem:[%s1476 + $0x10] sm:$0xf]
      %v1482 = vld [vmem:[%s1476 + $0x14] sm:$0xf]
      %v1483 = vld [vmem:[%s1476 + $0x18] sm:$0xf]
      %v1484 = vld [vmem:[%s1476 + $0x1c] sm:$0xf]
      %v1485 = vld [vmem:[%s1476 + $0x20] sm:$0xf]
      %v1486 = vld [vmem:[%s1476 + $0x24] sm:$0xf]
      %v1487 = vld [vmem:[%s1476 + $0x28] sm:$0xf]
      %v1488 = vld [vmem:[%s1476 + $0x2c] sm:$0xf]
      %v1489 = vld [vmem:[%s1476 + $0x30] sm:$0xf]
      %v1490 = vld [vmem:[%s1476 + $0x34] sm:$0xf]
      %v1491 = vld [vmem:[%s1476 + $0x38] sm:$0xf]
      %v1492 = vld [vmem:[%s1476 + $0x3c] sm:$0xf]
      %v1493 = vpack.c.bf16 %v1461, %v1460
      %v1494 = vpack.c.bf16 %v1463, %v1462
      %v1495 = vpack.c.bf16 %v1465, %v1464
      %v1496 = vpack.c.bf16 %v1467, %v1466
      %v1497 = vpack.c.bf16 %v1469, %v1468
      %v1498 = vpack.c.bf16 %v1471, %v1470
      %v1499 = vpack.c.bf16 %v1473, %v1472
      %v1500 = vpack.c.bf16 %v1475, %v1474
      %s1501 = scalar_lea.vmem %s4, 384
      %v1502 = vld [vmem:[%s1501] sm:$0xff]
      %v1503 = vld [vmem:[%s1501 + $0x8] sm:$0xff]
      %v1504 = vld [vmem:[%s1501 + $0x10] sm:$0xff]
      %v1505 = vld [vmem:[%s1501 + $0x18] sm:$0xff]
      %v1506 = vld [vmem:[%s1501 + $0x20] sm:$0xff]
      %v1507 = vld [vmem:[%s1501 + $0x28] sm:$0xff]
      %v1508 = vld [vmem:[%s1501 + $0x30] sm:$0xff]
      %v1509 = vld [vmem:[%s1501 + $0x38] sm:$0xff]
      %v1510 = vld [vmem:[%s1501 + $0x40] sm:$0xff]
      %v1511 = vld [vmem:[%s1501 + $0x48] sm:$0xff]
      %v1512 = vld [vmem:[%s1501 + $0x50] sm:$0xff]
      %v1513 = vld [vmem:[%s1501 + $0x58] sm:$0xff]
      %v1514 = vld [vmem:[%s1501 + $0x60] sm:$0xff]
      %v1515 = vld [vmem:[%s1501 + $0x68] sm:$0xff]
      %v1516 = vld [vmem:[%s1501 + $0x70] sm:$0xff]
      %v1517 = vld [vmem:[%s1501 + $0x78] sm:$0xff]
      %1519 = vset.pattern.permute.xlu0 0
      %1520 = vperm.xlu0 %1519, %v1502
      %v1521 = vpop.permute.xlu0 %1520
      %1524 = vset.pattern.permute.xlu0 0
      %1525 = vperm.xlu0 %1524, %v1503
      %v1526 = vpop.permute.xlu0 %1525
      %1529 = vset.pattern.permute.xlu0 0
      %1530 = vperm.xlu0 %1529, %v1504
      %v1531 = vpop.permute.xlu0 %1530
      %1534 = vset.pattern.permute.xlu0 0
      %1535 = vperm.xlu0 %1534, %v1505
      %v1536 = vpop.permute.xlu0 %1535
      %1539 = vset.pattern.permute.xlu0 0
      %1540 = vperm.xlu0 %1539, %v1506
      %v1541 = vpop.permute.xlu0 %1540
      %1544 = vset.pattern.permute.xlu0 0
      %1545 = vperm.xlu0 %1544, %v1507
      %v1546 = vpop.permute.xlu0 %1545
      %1549 = vset.pattern.permute.xlu0 0
      %1550 = vperm.xlu0 %1549, %v1508
      %v1551 = vpop.permute.xlu0 %1550
      %1554 = vset.pattern.permute.xlu0 0
      %1555 = vperm.xlu0 %1554, %v1509
      %v1556 = vpop.permute.xlu0 %1555
      %1559 = vset.pattern.permute.xlu0 0
      %1560 = vperm.xlu0 %1559, %v1510
      %v1561 = vpop.permute.xlu0 %1560
      %1564 = vset.pattern.permute.xlu0 0
      %1565 = vperm.xlu0 %1564, %v1511
      %v1566 = vpop.permute.xlu0 %1565
      %1569 = vset.pattern.permute.xlu0 0
      %1570 = vperm.xlu0 %1569, %v1512
      %v1571 = vpop.permute.xlu0 %1570
      %1574 = vset.pattern.permute.xlu0 0
      %1575 = vperm.xlu0 %1574, %v1513
      %v1576 = vpop.permute.xlu0 %1575
      %1579 = vset.pattern.permute.xlu0 0
      %1580 = vperm.xlu0 %1579, %v1514
      %v1581 = vpop.permute.xlu0 %1580
      %1584 = vset.pattern.permute.xlu0 0
      %1585 = vperm.xlu0 %1584, %v1515
      %v1586 = vpop.permute.xlu0 %1585
      %1589 = vset.pattern.permute.xlu0 0
      %1590 = vperm.xlu0 %1589, %v1516
      %v1591 = vpop.permute.xlu0 %1590
      %1594 = vset.pattern.permute.xlu0 0
      %1595 = vperm.xlu0 %1594, %v1517
      %v1596 = vpop.permute.xlu0 %1595
      %v1614 = vunpack.c.l.b16 %v1477
      %v1615 = vunpack.c.l.b16 %v1478
      %v1616 = vunpack.c.l.b16 %v1479
      %v1617 = vunpack.c.l.b16 %v1480
      %v1618 = vunpack.c.l.b16 %v1481
      %v1619 = vunpack.c.l.b16 %v1482
      %v1620 = vunpack.c.l.b16 %v1483
      %v1621 = vunpack.c.l.b16 %v1484
      %v1622 = vunpack.c.l.b16 %v1485
      %v1623 = vunpack.c.l.b16 %v1486
      %v1624 = vunpack.c.l.b16 %v1487
      %v1625 = vunpack.c.l.b16 %v1488
      %v1626 = vunpack.c.l.b16 %v1489
      %v1627 = vunpack.c.l.b16 %v1490
      %v1628 = vunpack.c.l.b16 %v1491
      %v1629 = vunpack.c.l.b16 %v1492
      %v1630 = vpack.c.b16 %v1615, %v1614
      %v1631 = vpack.c.b16 %v1617, %v1616
      %v1632 = vpack.c.b16 %v1619, %v1618
      %v1633 = vpack.c.b16 %v1621, %v1620
      %v1634 = vpack.c.b16 %v1623, %v1622
      %v1635 = vpack.c.b16 %v1625, %v1624
      %v1636 = vpack.c.b16 %v1627, %v1626
      %v1637 = vpack.c.b16 %v1629, %v1628
      %1646 = vmatprep.subr.bf16.mxu0 0
      %1647 = vmatpush1.bf16.msra.mxu0 %v1493
      %1648 = vmatprep.subr.bf16.mxu0 0
      %1649 = vmatpush1.bf16.msra.mxu0 %v1494
      %1650 = vmatprep.subr.bf16.mxu0 0
      %1651 = vmatpush1.bf16.msra.mxu0 %v1495
      %1652 = vmatprep.subr.bf16.mxu0 0
      %1653 = vmatpush1.bf16.msra.mxu0 %v1496
      %1654 = vmatprep.subr.bf16.mxu0 0
      %1655 = vmatpush1.bf16.msra.mxu0 %v1497
      %1656 = vmatprep.subr.bf16.mxu0 0
      %1657 = vmatpush1.bf16.msra.mxu0 %v1498
      %1658 = vmatprep.subr.bf16.mxu0 0
      %1659 = vmatpush1.bf16.msra.mxu0 %v1499
      %1660 = vmatprep.subr.bf16.mxu0 0
      %1661 = vmatpush1.bf16.msra.mxu0 %v1500
      %1662 = vmatprep.subr.bf16.mxu0 0
      %1663 = vmatpush1.bf16.msra.mxu0 0
      %1664 = vmatprep.subr.bf16.mxu0 0
      %1665 = vmatpush1.bf16.msra.mxu0 0
      %1666 = vmatprep.subr.bf16.mxu0 0
      %1667 = vmatpush1.bf16.msra.mxu0 0
      %1668 = vmatprep.subr.bf16.mxu0 0
      %1669 = vmatpush1.bf16.msra.mxu0 0
      %1670 = vmatprep.subr.bf16.mxu0 0
      %1671 = vmatpush1.bf16.msra.mxu0 0
      %1672 = vmatprep.subr.bf16.mxu0 0
      %1673 = vmatpush1.bf16.msra.mxu0 0
      %1674 = vmatprep.subr.bf16.mxu0 0
      %1675 = vmatpush1.bf16.msra.mxu0 0
      %1676 = vmatprep.subr.bf16.mxu0 0
      %1677 = vmatpush1.bf16.msra.mxu0 0
      %1678 = vmatprep.mubr.bf16.mxu0 0
      %1679 = vmatmul.mubr.bf16.gmra.mrb[0].mxu0 %v1630
      %v1680 = vpop.f32.mrb[0].mxu0
      %v1681 = vadd.f32 %v1521, %v1680
      %v1682 = vpop.f32.mrb[0].mxu0
      %v1683 = vpop.f32.mrb[0].mxu0
      %v1684 = vadd.f32 %v1526, %v1683
      %v1685 = vpop.f32.mrb[0].mxu0
      %1686 = vmatprep.mubr.bf16.mxu0 0
      %1687 = vmatmul.mubr.bf16.gmra.mrb[0].mxu0 %v1631
      %v1688 = vpop.f32.mrb[0].mxu0
      %v1689 = vadd.f32 %v1531, %v1688
      %v1690 = vpop.f32.mrb[0].mxu0
      %v1691 = vpop.f32.mrb[0].mxu0
      %v1692 = vadd.f32 %v1536, %v1691
      %v1693 = vpop.f32.mrb[0].mxu0
      %1694 = vmatprep.mubr.bf16.mxu0 0
      %1695 = vmatmul.mubr.bf16.gmra.mrb[0].mxu0 %v1632
      %v1696 = vpop.f32.mrb[0].mxu0
      %v1697 = vadd.f32 %v1541, %v1696
      %v1698 = vpop.f32.mrb[0].mxu0
      %v1699 = vpop.f32.mrb[0].mxu0
      %v1700 = vadd.f32 %v1546, %v1699
      %v1701 = vpop.f32.mrb[0].mxu0
      %1702 = vmatprep.mubr.bf16.mxu0 0
      %1703 = vmatmul.mubr.bf16.gmra.mrb[0].mxu0 %v1633
      %v1704 = vpop.f32.mrb[0].mxu0
      %v1705 = vadd.f32 %v1551, %v1704
      %v1706 = vpop.f32.mrb[0].mxu0
      %v1707 = vpop.f32.mrb[0].mxu0
      %v1708 = vadd.f32 %v1556, %v1707
      %v1709 = vpop.f32.mrb[0].mxu0
      %1710 = vmatprep.mubr.bf16.mxu0 0
      %1711 = vmatmul.mubr.bf16.gmra.mrb[0].mxu0 %v1634
      %v1712 = vpop.f32.mrb[0].mxu0
      %v1713 = vadd.f32 %v1561, %v1712
      %v1714 = vpop.f32.mrb[0].mxu0
      %v1715 = vpop.f32.mrb[0].mxu0
      %v1716 = vadd.f32 %v1566, %v1715
      %v1717 = vpop.f32.mrb[0].mxu0
      %1718 = vmatprep.mubr.bf16.mxu0 0
      %1719 = vmatmul.mubr.bf16.gmra.mrb[0].mxu0 %v1635
      %v1720 = vpop.f32.mrb[0].mxu0
      %v1721 = vadd.f32 %v1571, %v1720
      %v1722 = vpop.f32.mrb[0].mxu0
      %v1723 = vpop.f32.mrb[0].mxu0
      %v1724 = vadd.f32 %v1576, %v1723
      %v1725 = vpop.f32.mrb[0].mxu0
      %1726 = vmatprep.mubr.bf16.mxu0 0
      %1727 = vmatmul.mubr.bf16.gmra.mrb[0].mxu0 %v1636
      %v1728 = vpop.f32.mrb[0].mxu0
      %v1729 = vadd.f32 %v1581, %v1728
      %v1730 = vpop.f32.mrb[0].mxu0
      %v1731 = vpop.f32.mrb[0].mxu0
      %v1732 = vadd.f32 %v1586, %v1731
      %v1733 = vpop.f32.mrb[0].mxu0
      %1734 = vmatprep.mubr.bf16.mxu0 0
      %1735 = vmatmul.mubr.bf16.gmra.mrb[0].mxu0 %v1637
      %v1736 = vpop.f32.mrb[0].mxu0
      %v1737 = vadd.f32 %v1591, %v1736
      %v1738 = vpop.f32.mrb[0].mxu0
      %v1739 = vpop.f32.mrb[0].mxu0
      %v1740 = vadd.f32 %v1596, %v1739
      %v1741 = vpop.f32.mrb[0].mxu0
      %1742 = vdwg.mxu0
      %v1743 = vmax.f32 %v1681, 0.0
      %v1744 = vmax.f32 %v1684, 0.0
      %v1745 = vmax.f32 %v1689, 0.0
      %v1746 = vmax.f32 %v1692, 0.0
      %v1747 = vmax.f32 %v1697, 0.0
      %v1748 = vmax.f32 %v1700, 0.0
      %v1749 = vmax.f32 %v1705, 0.0
      %v1750 = vmax.f32 %v1708, 0.0
      %v1751 = vmax.f32 %v1713, 0.0
      %v1752 = vmax.f32 %v1716, 0.0
      %v1753 = vmax.f32 %v1721, 0.0
      %v1754 = vmax.f32 %v1724, 0.0
      %v1755 = vmax.f32 %v1729, 0.0
      %v1756 = vmax.f32 %v1732, 0.0
      %v1757 = vmax.f32 %v1737, 0.0
      %v1758 = vmax.f32 %v1740, 0.0
      %v1759 = vadd.f32 %v1177, %v1743
      %v1760 = vadd.f32 %v1178, %v1744
      %v1761 = vadd.f32 %v1179, %v1745
      %v1762 = vadd.f32 %v1180, %v1746
      %v1763 = vadd.f32 %v1181, %v1747
      %v1764 = vadd.f32 %v1182, %v1748
      %v1765 = vadd.f32 %v1183, %v1749
      %v1766 = vadd.f32 %v1184, %v1750
      %v1767 = vadd.f32 %v1185, %v1751
      %v1768 = vadd.f32 %v1186, %v1752
      %v1769 = vadd.f32 %v1187, %v1753
      %v1770 = vadd.f32 %v1188, %v1754
      %v1771 = vadd.f32 %v1189, %v1755
      %v1772 = vadd.f32 %v1190, %v1756
      %v1773 = vadd.f32 %v1191, %v1757
      %v1774 = vadd.f32 %v1192, %v1758
      %v1775 = vld [vmem:[%s5] sm:$0xf]
      %v1776 = vld [vmem:[%s5 + $0x4] sm:$0x1]
      %v1777 = vpack.c.bf16 %v1760, %v1759
      %v1778 = vpack.c.bf16 %v1762, %v1761
      %v1779 = vpack.c.bf16 %v1764, %v1763
      %v1780 = vpack.c.bf16 %v1766, %v1765
      %v1781 = vpack.c.bf16 %v1768, %v1767
      %v1782 = vpack.c.bf16 %v1770, %v1769
      %v1783 = vpack.c.bf16 %v1772, %v1771
      %v1784 = vpack.c.bf16 %v1774, %v1773
      %v1785 = vld [vmem:[%s6] sm:$0xff]
      %v1786 = vld [vmem:[%s6 + $0x8] sm:$0x3]
      %1788 = vset.pattern.permute.xlu0 0
      %1789 = vperm.xlu0 %1788, %v1785
      %v1790 = vpop.permute.xlu0 %1789
      %1793 = vset.pattern.permute.xlu0 0
      %1794 = vperm.xlu0 %1793, %v1786
      %v1795 = vpop.permute.xlu0 %1794
      %v1799 = vunpack.c.l.b16 %v1775
      %v1800 = vunpack.c.l.b16 %v1776
      %v1801 = vpack.c.b16 %v1800, %v1799
      %1803 = vmatprep.subr.bf16.mxu0 0
      %1804 = vmatpush1.bf16.msra.mxu0 %v1777
      %1805 = vmatprep.subr.bf16.mxu0 0
      %1806 = vmatpush1.bf16.msra.mxu0 %v1778
      %1807 = vmatprep.subr.bf16.mxu0 0
      %1808 = vmatpush1.bf16.msra.mxu0 %v1779
      %1809 = vmatprep.subr.bf16.mxu0 0
      %1810 = vmatpush1.bf16.msra.mxu0 %v1780
      %1811 = vmatprep.subr.bf16.mxu0 0
      %1812 = vmatpush1.bf16.msra.mxu0 %v1781
      %1813 = vmatprep.subr.bf16.mxu0 0
      %1814 = vmatpush1.bf16.msra.mxu0 %v1782
      %1815 = vmatprep.subr.bf16.mxu0 0
      %1816 = vmatpush1.bf16.msra.mxu0 %v1783
      %1817 = vmatprep.subr.bf16.mxu0 0
      %1818 = vmatpush1.bf16.msra.mxu0 %v1784
      %1819 = vmatprep.subr.bf16.mxu0 0
      %1820 = vmatpush1.bf16.msra.mxu0 0
      %1821 = vmatprep.subr.bf16.mxu0 0
      %1822 = vmatpush1.bf16.msra.mxu0 0
      %1823 = vmatprep.subr.bf16.mxu0 0
      %1824 = vmatpush1.bf16.msra.mxu0 0
      %1825 = vmatprep.subr.bf16.mxu0 0
      %1826 = vmatpush1.bf16.msra.mxu0 0
      %1827 = vmatprep.subr.bf16.mxu0 0
      %1828 = vmatpush1.bf16.msra.mxu0 0
      %1829 = vmatprep.subr.bf16.mxu0 0
      %1830 = vmatpush1.bf16.msra.mxu0 0
      %1831 = vmatprep.subr.bf16.mxu0 0
      %1832 = vmatpush1.bf16.msra.mxu0 0
      %1833 = vmatprep.subr.bf16.mxu0 0
      %1834 = vmatpush1.bf16.msra.mxu0 0
      %1835 = vmatprep.mubr.bf16.mxu0 0
      %1836 = vmatmul.mubr.bf16.gmra.mrb[0].mxu0 %v1801
      %v1837 = vpop.f32.mrb[0].mxu0
      %v1838 = vadd.f32 %v1790, %v1837
      %v1839 = vpop.f32.mrb[0].mxu0
      %v1840 = vpop.f32.mrb[0].mxu0
      %v1841 = vadd.f32 %v1795, %v1840
      %v1842 = vpop.f32.mrb[0].mxu0
      %1843 = vdwg.mxu0
      %v1844 = vmax.f32 %v1838, 0.0
      %v1845 = vmax.f32 %v1841, 0.0
      %vm1846 = vcmask 64512
      %1847 = vst.msk [vmem:[%s309] sm:$0xff] %vm1846, %v1844
      %vm1848 = vcmask 58368
      %1849 = vst.msk [vmem:[%s309 + $0x8] sm:$0x3] %vm1848, %v1845
      %p1850 = scmp.lt.s32.totalorder %s22, 1
      %s1851 = scalar_select %p1850, %s22, 1
      %p1852 = scmp.lt.s32.totalorder %s23, 0
      %s1853 = scalar_select %p1852, %s23, 0
      %s1854 = smul.addr %s1851, 2
      %s1855 = sadd.s32 %s1853, %s1854
      %s1856 = smul.addr %s1855, 8
      %s1857 = scalar_lea.vmem %s7, %s1856
      // Predicated region
      $region49: #{tpu_custom_call.1} parent=47 // pred_check
        %p1858 = pneg %p204
      $region50: #{tpu_custom_call.1} parent=47 // pred_check_branch
        %1860 = sbr.rel (%p1858) target = $region52
      $region51: #{tpu_custom_call.1} parent=47 // pred_region
        _
      $region52: #{tpu_custom_call.1} parent=47 // pred_fallthru
        _
    $region48: #{tpu_custom_call.1} parent=5 // pred_fallthru
      _
    %p1861 = scmp.le.s32.totalorder 2, %s13
    // Predicated region
    $region53: #{tpu_custom_call.1} parent=5 // pred_check
      %p1862 = pneg %p1861
    $region54: #{tpu_custom_call.1} parent=5 // pred_check_branch
      %1864 = sbr.rel (%p1862) target = $region56
    $region55: #{tpu_custom_call.1} parent=5 // pred_region
      %s1865 = ssub.s32 %s13, 2
      // Predicated region
      $region57: #{tpu_custom_call.1} parent=55 // pred_check
        %p1866 = pneg %p210
      $region58: #{tpu_custom_call.1} parent=55 // pred_check_branch
        %1868 = sbr.rel (%p1866) target = $region60
      $region59: #{tpu_custom_call.1} parent=55 // pred_region
        %p1869 = scmp.lt.s32.totalorder %s24, 1
        %s1870 = scalar_select %p1869, %s24, 1
        %p1871 = scmp.lt.s32.totalorder %s25, 0
        %s1872 = scalar_select %p1871, %s25, 0
        %s1873 = smul.addr %s1870, 2
        %s1874 = sadd.s32 %s1872, %s1873
        %s1875 = smul.addr %s1874, 8
        %s1876 = scalar_lea.vmem %s7, %s1875
      $region60: #{tpu_custom_call.1} parent=55 // pred_fallthru
        _
    $region56: #{tpu_custom_call.1} parent=5 // pred_fallthru
      _
  $region6: #{tpu_custom_call.1} parent=0 // loop_footer
    %s17 = sadd.s32 1, %s13
  $region7: #{tpu_custom_call.1} parent=0 // loop_footer_branch
    %12 = sbr.rel target = $region3
  $region8: #{tpu_custom_call.1} parent=0 // loop_exit
    _

</llo_original>
